<compile_context>
chip_gen: v6e
topology: v6e:2x2x1
jax: 0.10.0
libtpu: 0.0.40
codegen_flags: <defaults>
</compile_context>

<pallas_src>
import jax
import jax.numpy as jnp
import numpy as np
from jax.experimental import pallas as pl
from jax.experimental.pallas import tpu as pltpu

N_QUBITS = 4
DIM = 2 ** N_QUBITS          # 16
LANE_CHUNK = 512             # in-kernel lane chunk (keeps intermediates in vregs)
_HI = jax.lax.Precision.HIGHEST


def _round_up(n, m):
    return ((n + m - 1) // m) * m


def _mm(a, b):
    return jnp.matmul(a, b, precision=_HI)


# ----------------------------- glue (plain JAX) -----------------------------

def _ry_mat(theta):
    c = jnp.cos(theta / 2.0)
    s = jnp.sin(theta / 2.0)
    return jnp.stack([jnp.stack([c, -s]), jnp.stack([s, c])])


def _cnot_adjacent(i):
    # CNOT on wires (i, i+1); wire 0 is the most-significant qubit.
    cnot = jnp.array(
        [[1.0, 0, 0, 0], [0, 1.0, 0, 0], [0, 0, 0, 1.0], [0, 0, 1.0, 0]],
        dtype=jnp.float32,
    )
    left = jnp.eye(2 ** i, dtype=jnp.float32)
    right = jnp.eye(2 ** (N_QUBITS - i - 2), dtype=jnp.float32)
    return jnp.kron(jnp.kron(left, cnot), right)


def _ry_layer(w_row):
    u = _ry_mat(w_row[0])
    for i in range(1, N_QUBITS):
        u = jnp.kron(u, _ry_mat(w_row[i]))
    return u


def build_fixed_unitary(weights):
    """16x16 real unitary for the weight-dependent part of the circuit."""
    cnot_chain = jnp.eye(DIM, dtype=jnp.float32)
    for i in range(N_QUBITS - 1):
        cnot_chain = _mm(_cnot_adjacent(i), cnot_chain)
    u = jnp.eye(DIM, dtype=jnp.float32)
    for layer in range(2):
        u = _mm(_ry_layer(weights[layer]), _mm(cnot_chain, u))
    return u.astype(jnp.float32)


def _bit_mask_np():
    """M[k, i] = bit of wire i (MSB-first) of basis index k, float32 {0,1}."""
    k = np.arange(DIM)
    m = np.zeros((DIM, N_QUBITS), np.float32)
    for i in range(N_QUBITS):
        m[:, i] = (k >> (N_QUBITS - 1 - i)) & 1
    return m


def _signs_block_np():
    """Block-diagonal (8, 32) PauliZ sign matrix for the two packed halves."""
    signs_t = (1.0 - 2.0 * _bit_mask_np()).T          # (4, 16)
    blk = np.zeros((2 * N_QUBITS, 2 * DIM), np.float32)
    blk[:N_QUBITS, :DIM] = signs_t
    blk[N_QUBITS:, DIM:] = signs_t
    return blk


# ------------------------------ Pallas kernel -------------------------------

def _make_kernel(tb, chunk):
    n_chunks = tb // chunk
    assert n_chunks * chunk == tb

    def kernel(x_ref, u_ref, signs_ref, mask_ref, out_ref):
        # x_ref:     (8, tb)   rows 0-3 = angles of half A, rows 4-7 = half B
        # u_ref:     (16, 16)  weight-dependent unitary
        # signs_ref: (8, 32)   block-diag PauliZ sign matrix
        # mask_ref:  (16, 4)   bit mask per (basis state, qubit)
        # out_ref:   (8, tb)   <Z_i> per sample (same half packing as x)
        u = u_ref[...]
        signs_block = signs_ref[...]
        mask = mask_ref[...]

        for cix in range(n_chunks):                    # static unrolled chunks
            lo = cix * chunk
            x = x_ref[:, lo:lo + chunk]                # (8, chunk)
            half = 0.5 * x
            c = jnp.cos(half)
            s = jnp.sin(half)
            d = s - c                                  # FMA blend: c + m*(s-c)

            halves = []
            for h in range(2):                         # two packed half-batches
                r0 = N_QUBITS * h
                # psi0 init directly from qubit 0's factor (no ones() init)
                state = c[r0:r0 + 1, :] + mask[:, 0:1] * d[r0:r0 + 1, :]
                for q in range(1, N_QUBITS):
                    state = state * (c[r0 + q:r0 + q + 1, :]
                                     + mask[:, q:q + 1] * d[r0 + q:r0 + q + 1, :])
                psi = jnp.dot(u, state, preferred_element_type=jnp.float32,
                              precision=_HI)           # (16, chunk)
                halves.append(psi * psi)               # real state -> |amp|^2

            probs = jnp.concatenate(halves, axis=0)    # (32, chunk)
            out_ref[:, lo:lo + chunk] = jnp.dot(
                signs_block, probs, preferred_element_type=jnp.float32,
                precision=_HI)                         # (8, chunk), full store

    return kernel


# --------------------------------- wrapper -----------------------------------

def _forward_impl(x, weights, tb):
    """Equivalent of QuantumLayer.forward: reshape(-1, 4) -> per-row circuit."""
    xr = x.reshape(-1, N_QUBITS).astype(jnp.float32)
    b = xr.shape[0]

    # --- tile / grid sizing -------------------------------------------------
    half_raw = (b + 1) // 2                      # per-half batch size
    half_128 = _round_up(max(half_raw, 1), 128)  # lane-width aligned
    n_blocks = pl.cdiv(half_128, int(tb))
    if half_128 >= 256:
        n_blocks = max(n_blocks, 2)              # >=2 blocks -> both v7x TCs busy
    tb_eff = _round_up(pl.cdiv(half_128, n_blocks), 128)
    if tb_eff > LANE_CHUNK:
        tb_eff = _round_up(tb_eff, LANE_CHUNK)
        chunk = LANE_CHUNK
    else:
        chunk = tb_eff
    half_p = n_blocks * tb_eff                   # padded per-half batch
    bp = 2 * half_p                              # padded total batch

    # --- pack two half-batches across the 8 sublanes -------------------------
    x_pad = jnp.zeros((bp, N_QUBITS), jnp.float32).at[:b].set(xr)
    x_packed = (x_pad.reshape(2, half_p, N_QUBITS)
                .transpose(0, 2, 1)
                .reshape(2 * N_QUBITS, half_p))            # (8, half_p)

    u_fixed = build_fixed_unitary(weights)                  # (16, 16)
    signs_block = jnp.asarray(_signs_block_np())            # (8, 32)
    bit_mask = jnp.asarray(_bit_mask_np())                  # (16, 4)

    out_packed = pl.pallas_call(
        _make_kernel(tb_eff, chunk),
        out_shape=jax.ShapeDtypeStruct((2 * N_QUBITS, half_p), jnp.float32),
        grid=(n_blocks,),
        in_specs=[
            pl.BlockSpec((2 * N_QUBITS, tb_eff), lambda i: (0, i)),
            pl.BlockSpec((DIM, DIM), lambda i: (0, 0)),
            pl.BlockSpec((2 * N_QUBITS, 2 * DIM), lambda i: (0, 0)),
            pl.BlockSpec((DIM, N_QUBITS), lambda i: (0, 0)),
        ],
        out_specs=pl.BlockSpec((2 * N_QUBITS, tb_eff), lambda i: (0, i)),
        compiler_params=pltpu.CompilerParams(
            dimension_semantics=("parallel",)),
    )(x_packed, u_fixed, signs_block, bit_mask)

    # --- unpack halves back to (b, 4) ----------------------------------------
    out = (out_packed.reshape(2, N_QUBITS, half_p)
           .transpose(0, 2, 1)
           .reshape(bp, N_QUBITS))
    return out[:b]


_forward_jit = jax.jit(_forward_impl, static_argnums=(2,))


def quantum_layer_forward(x, weights, *, tb=8192):
    return _forward_jit(x, weights, int(tb))


# ------------------ independent numpy (float64) reference --------------------

def reference_forward(x, weights):
    """Sequential gate application on a (2,2,2,2) tensor — independent of the
    kernel's factorized-unitary construction."""
    xr = np.asarray(x, dtype=np.float64).reshape(-1, N_QUBITS)
    w = np.asarray(weights, dtype=np.float64)

    def ry(t):
        c, s = np.cos(t / 2.0), np.sin(t / 2.0)
        return np.array([[c, -s], [s, c]])

    def apply_1q(psi, mat, wire):
        psi = np.moveaxis(psi, wire, 0)
        psi = np.tensordot(mat, psi, axes=([1], [0]))
        return np.moveaxis(psi, 0, wire)

    def apply_cnot(psi, ctrl, tgt):
        psi = np.moveaxis(psi, (ctrl, tgt), (0, 1))
        new = psi.copy()
        new[1] = psi[1][::-1]
        return np.moveaxis(new, (0, 1), (ctrl, tgt))

    z_signs = 1.0 - 2.0 * _bit_mask_np().astype(np.float64)   # (16, 4)
    outs = np.zeros((xr.shape[0], N_QUBITS), np.float64)
    for n, angles in enumerate(xr):
        psi = np.zeros((2,) * N_QUBITS)
        psi[(0,) * N_QUBITS] = 1.0
        for i in range(N_QUBITS):
            psi = apply_1q(psi, ry(angles[i]), i)
        for layer in range(2):
            for i in range(N_QUBITS - 1):
                psi = apply_cnot(psi, i, i + 1)
            for i in range(N_QUBITS):
                psi = apply_1q(psi, ry(w[layer, i]), i)
        probs = (psi ** 2).reshape(-1)
        outs[n] = probs @ z_signs
    return outs


# ----------------------------------- main ------------------------------------

if __name__ == "__main__":
    key = jax.random.PRNGKey(0)
    kx, kw = jax.random.split(key)

    # x: any tensor whose total element count is a multiple of n_qubits.
    x = jax.random.normal(kx, (2, 4, 16, 16), dtype=jnp.float32)   # -> 512 samples
    # TorchLayer default init for the (2, n_qubits) RY weights: U(0, 2*pi).
    weights = jax.random.uniform(kw, (2, N_QUBITS), dtype=jnp.float32,
                                 minval=0.0, maxval=2.0 * np.pi)

    out = quantum_layer_forward(x, weights)
    out = jax.block_until_ready(out)
    assert out.shape == (512, N_QUBITS)

    ref = reference_forward(x, weights)
    np.testing.assert_allclose(np.asarray(out, dtype=np.float64), ref,
                               rtol=1e-4, atol=1e-4)

    print("KERNEL_OK")
</pallas_src>

<mosaic_0001>
module attributes {stable_mosaic.version = 11 : i64} {
  func.func @kernel(%arg0: i32, %arg1: memref<8x128xf32, #tpu.memory_space<vmem>>, %arg2: memref<16x16xf32, #tpu.memory_space<vmem>>, %arg3: memref<8x32xf32, #tpu.memory_space<vmem>>, %arg4: memref<16x4xf32, #tpu.memory_space<vmem>>, %arg5: memref<8x128xf32, #tpu.memory_space<vmem>>) attributes {dimension_semantics = [#tpu.dimension_semantics<parallel>], iteration_bounds = array<i64: 2>, scalar_prefetch = 0 : i64, scratch_operands = 0 : i64, tpu.core_type = #tpu.core_type<tc>, window_params = [{transform_indices = @transform_0, window_bounds = array<i64: 8, 128>}, {pipeline_mode = #tpu.pipeline_mode<synchronous>, transform_indices = @transform_1, window_bounds = array<i64: 16, 16>}, {pipeline_mode = #tpu.pipeline_mode<synchronous>, transform_indices = @transform_2, window_bounds = array<i64: 8, 32>}, {pipeline_mode = #tpu.pipeline_mode<synchronous>, transform_indices = @transform_3, window_bounds = array<i64: 16, 4>}, {transform_indices = @transform_4, window_bounds = array<i64: 8, 128>}]} {
    %c0 = arith.constant 0 : index
    %c0_0 = arith.constant 0 : index
    %0 = vector.load %arg2[%c0, %c0_0] : memref<16x16xf32, #tpu.memory_space<vmem>>, vector<16x16xf32>
    %c0_1 = arith.constant 0 : index
    %c0_2 = arith.constant 0 : index
    %1 = vector.load %arg3[%c0_1, %c0_2] : memref<8x32xf32, #tpu.memory_space<vmem>>, vector<8x32xf32>
    %c0_3 = arith.constant 0 : index
    %c0_4 = arith.constant 0 : index
    %2 = vector.load %arg4[%c0_3, %c0_4] : memref<16x4xf32, #tpu.memory_space<vmem>>, vector<16x4xf32>
    %c0_5 = arith.constant 0 : index
    %c0_6 = arith.constant 0 : index
    %3 = vector.load %arg1[%c0_5, %c0_6] : memref<8x128xf32, #tpu.memory_space<vmem>>, vector<8x128xf32>
    %cst = arith.constant 5.000000e-01 : f32
    %4 = vector.broadcast %cst : f32 to vector<8x128xf32>
    %5 = arith.mulf %4, %3 : vector<8x128xf32>
    %6 = math.cos %5 : vector<8x128xf32>
    %7 = math.sin %5 : vector<8x128xf32>
    %8 = arith.subf %7, %6 : vector<8x128xf32>
    %9 = vector.extract_strided_slice %6 {offsets = [0, 0], sizes = [1, 128], strides = [1, 1]} : vector<8x128xf32> to vector<1x128xf32>
    %10 = vector.extract_strided_slice %2 {offsets = [0, 0], sizes = [16, 1], strides = [1, 1]} : vector<16x4xf32> to vector<16x1xf32>
    %11 = vector.extract_strided_slice %8 {offsets = [0, 0], sizes = [1, 128], strides = [1, 1]} : vector<8x128xf32> to vector<1x128xf32>
    %12 = vector.broadcast %10 : vector<16x1xf32> to vector<16x128xf32>
    %13 = vector.broadcast %11 : vector<1x128xf32> to vector<16x128xf32>
    %14 = arith.mulf %12, %13 : vector<16x128xf32>
    %15 = vector.broadcast %9 : vector<1x128xf32> to vector<16x128xf32>
    %16 = arith.addf %15, %14 : vector<16x128xf32>
    %17 = vector.extract_strided_slice %6 {offsets = [1, 0], sizes = [1, 128], strides = [1, 1]} : vector<8x128xf32> to vector<1x128xf32>
    %18 = vector.extract_strided_slice %2 {offsets = [0, 1], sizes = [16, 1], strides = [1, 1]} : vector<16x4xf32> to vector<16x1xf32>
    %19 = vector.extract_strided_slice %8 {offsets = [1, 0], sizes = [1, 128], strides = [1, 1]} : vector<8x128xf32> to vector<1x128xf32>
    %20 = vector.broadcast %18 : vector<16x1xf32> to vector<16x128xf32>
    %21 = vector.broadcast %19 : vector<1x128xf32> to vector<16x128xf32>
    %22 = arith.mulf %20, %21 : vector<16x128xf32>
    %23 = vector.broadcast %17 : vector<1x128xf32> to vector<16x128xf32>
    %24 = arith.addf %23, %22 : vector<16x128xf32>
    %25 = arith.mulf %16, %24 : vector<16x128xf32>
    %26 = vector.extract_strided_slice %6 {offsets = [2, 0], sizes = [1, 128], strides = [1, 1]} : vector<8x128xf32> to vector<1x128xf32>
    %27 = vector.extract_strided_slice %2 {offsets = [0, 2], sizes = [16, 1], strides = [1, 1]} : vector<16x4xf32> to vector<16x1xf32>
    %28 = vector.extract_strided_slice %8 {offsets = [2, 0], sizes = [1, 128], strides = [1, 1]} : vector<8x128xf32> to vector<1x128xf32>
    %29 = vector.broadcast %27 : vector<16x1xf32> to vector<16x128xf32>
    %30 = vector.broadcast %28 : vector<1x128xf32> to vector<16x128xf32>
    %31 = arith.mulf %29, %30 : vector<16x128xf32>
    %32 = vector.broadcast %26 : vector<1x128xf32> to vector<16x128xf32>
    %33 = arith.addf %32, %31 : vector<16x128xf32>
    %34 = arith.mulf %25, %33 : vector<16x128xf32>
    %35 = vector.extract_strided_slice %6 {offsets = [3, 0], sizes = [1, 128], strides = [1, 1]} : vector<8x128xf32> to vector<1x128xf32>
    %36 = vector.extract_strided_slice %2 {offsets = [0, 3], sizes = [16, 1], strides = [1, 1]} : vector<16x4xf32> to vector<16x1xf32>
    %37 = vector.extract_strided_slice %8 {offsets = [3, 0], sizes = [1, 128], strides = [1, 1]} : vector<8x128xf32> to vector<1x128xf32>
    %38 = vector.broadcast %36 : vector<16x1xf32> to vector<16x128xf32>
    %39 = vector.broadcast %37 : vector<1x128xf32> to vector<16x128xf32>
    %40 = arith.mulf %38, %39 : vector<16x128xf32>
    %41 = vector.broadcast %35 : vector<1x128xf32> to vector<16x128xf32>
    %42 = arith.addf %41, %40 : vector<16x128xf32>
    %43 = arith.mulf %34, %42 : vector<16x128xf32>
    %cst_7 = arith.constant dense<0.000000e+00> : vector<16x128xf32>
    %44 = tpu.matmul %0, %43, %cst_7 {dimension_numbers = #tpu.dot_dimension_numbers<[1], [0], [0], [1], [0, 0, 1, 1], [], []>, precision = #tpu.contract_precision<fp32>} : vector<16x16xf32>, vector<16x128xf32>, vector<16x128xf32> -> vector<16x128xf32>
    %45 = arith.mulf %44, %44 : vector<16x128xf32>
    %46 = vector.extract_strided_slice %6 {offsets = [4, 0], sizes = [1, 128], strides = [1, 1]} : vector<8x128xf32> to vector<1x128xf32>
    %47 = vector.extract_strided_slice %2 {offsets = [0, 0], sizes = [16, 1], strides = [1, 1]} : vector<16x4xf32> to vector<16x1xf32>
    %48 = vector.extract_strided_slice %8 {offsets = [4, 0], sizes = [1, 128], strides = [1, 1]} : vector<8x128xf32> to vector<1x128xf32>
    %49 = vector.broadcast %47 : vector<16x1xf32> to vector<16x128xf32>
    %50 = vector.broadcast %48 : vector<1x128xf32> to vector<16x128xf32>
    %51 = arith.mulf %49, %50 : vector<16x128xf32>
    %52 = vector.broadcast %46 : vector<1x128xf32> to vector<16x128xf32>
    %53 = arith.addf %52, %51 : vector<16x128xf32>
    %54 = vector.extract_strided_slice %6 {offsets = [5, 0], sizes = [1, 128], strides = [1, 1]} : vector<8x128xf32> to vector<1x128xf32>
    %55 = vector.extract_strided_slice %2 {offsets = [0, 1], sizes = [16, 1], strides = [1, 1]} : vector<16x4xf32> to vector<16x1xf32>
    %56 = vector.extract_strided_slice %8 {offsets = [5, 0], sizes = [1, 128], strides = [1, 1]} : vector<8x128xf32> to vector<1x128xf32>
    %57 = vector.broadcast %55 : vector<16x1xf32> to vector<16x128xf32>
    %58 = vector.broadcast %56 : vector<1x128xf32> to vector<16x128xf32>
    %59 = arith.mulf %57, %58 : vector<16x128xf32>
    %60 = vector.broadcast %54 : vector<1x128xf32> to vector<16x128xf32>
    %61 = arith.addf %60, %59 : vector<16x128xf32>
    %62 = arith.mulf %53, %61 : vector<16x128xf32>
    %63 = vector.extract_strided_slice %6 {offsets = [6, 0], sizes = [1, 128], strides = [1, 1]} : vector<8x128xf32> to vector<1x128xf32>
    %64 = vector.extract_strided_slice %2 {offsets = [0, 2], sizes = [16, 1], strides = [1, 1]} : vector<16x4xf32> to vector<16x1xf32>
    %65 = vector.extract_strided_slice %8 {offsets = [6, 0], sizes = [1, 128], strides = [1, 1]} : vector<8x128xf32> to vector<1x128xf32>
    %66 = vector.broadcast %64 : vector<16x1xf32> to vector<16x128xf32>
    %67 = vector.broadcast %65 : vector<1x128xf32> to vector<16x128xf32>
    %68 = arith.mulf %66, %67 : vector<16x128xf32>
    %69 = vector.broadcast %63 : vector<1x128xf32> to vector<16x128xf32>
    %70 = arith.addf %69, %68 : vector<16x128xf32>
    %71 = arith.mulf %62, %70 : vector<16x128xf32>
    %72 = vector.extract_strided_slice %6 {offsets = [7, 0], sizes = [1, 128], strides = [1, 1]} : vector<8x128xf32> to vector<1x128xf32>
    %73 = vector.extract_strided_slice %2 {offsets = [0, 3], sizes = [16, 1], strides = [1, 1]} : vector<16x4xf32> to vector<16x1xf32>
    %74 = vector.extract_strided_slice %8 {offsets = [7, 0], sizes = [1, 128], strides = [1, 1]} : vector<8x128xf32> to vector<1x128xf32>
    %75 = vector.broadcast %73 : vector<16x1xf32> to vector<16x128xf32>
    %76 = vector.broadcast %74 : vector<1x128xf32> to vector<16x128xf32>
    %77 = arith.mulf %75, %76 : vector<16x128xf32>
    %78 = vector.broadcast %72 : vector<1x128xf32> to vector<16x128xf32>
    %79 = arith.addf %78, %77 : vector<16x128xf32>
    %80 = arith.mulf %71, %79 : vector<16x128xf32>
    %cst_8 = arith.constant dense<0.000000e+00> : vector<16x128xf32>
    %81 = tpu.matmul %0, %80, %cst_8 {dimension_numbers = #tpu.dot_dimension_numbers<[1], [0], [0], [1], [0, 0, 1, 1], [], []>, precision = #tpu.contract_precision<fp32>} : vector<16x16xf32>, vector<16x128xf32>, vector<16x128xf32> -> vector<16x128xf32>
    %82 = arith.mulf %81, %81 : vector<16x128xf32>
    %83 = tpu.concatenate %45, %82 in 0 : vector<16x128xf32>, vector<16x128xf32> -> vector<32x128xf32>
    %cst_9 = arith.constant dense<0.000000e+00> : vector<8x128xf32>
    %84 = tpu.matmul %1, %83, %cst_9 {dimension_numbers = #tpu.dot_dimension_numbers<[1], [0], [0], [1], [0, 0, 1, 1], [], []>, precision = #tpu.contract_precision<fp32>} : vector<8x32xf32>, vector<32x128xf32>, vector<8x128xf32> -> vector<8x128xf32>
    %c0_10 = arith.constant 0 : index
    %c0_11 = arith.constant 0 : index
    %85 = vector.load %arg5[%c0_10, %c0_11] : memref<8x128xf32, #tpu.memory_space<vmem>>, vector<8x128xf32>
    tpu.vector_store %arg5[%c0_10, %c0_11], %84 {strides = array<i32>} : memref<8x128xf32, #tpu.memory_space<vmem>>, vector<8x128xf32>,
    return
  }
  func.func @transform_0(%arg0: i32) -> (i32, i32) {
    %c0_i32 = arith.constant 0 : i32
    %c0_i32_0 = arith.constant 0 : i32
    return %c0_i32, %arg0 : i32, i32
  }
  func.func @transform_1(%arg0: i32) -> (i32, i32) {
    %c0_i32 = arith.constant 0 : i32
    %c0_i32_0 = arith.constant 0 : i32
    %c0_i32_1 = arith.constant 0 : i32
    return %c0_i32, %c0_i32_0 : i32, i32
  }
  func.func @transform_2(%arg0: i32) -> (i32, i32) {
    %c0_i32 = arith.constant 0 : i32
    %c0_i32_0 = arith.constant 0 : i32
    %c0_i32_1 = arith.constant 0 : i32
    return %c0_i32, %c0_i32_0 : i32, i32
  }
  func.func @transform_3(%arg0: i32) -> (i32, i32) {
    %c0_i32 = arith.constant 0 : i32
    %c0_i32_0 = arith.constant 0 : i32
    %c0_i32_1 = arith.constant 0 : i32
    return %c0_i32, %c0_i32_0 : i32, i32
  }
  func.func @transform_4(%arg0: i32) -> (i32, i32) {
    %c0_i32 = arith.constant 0 : i32
    %c0_i32_0 = arith.constant 0 : i32
    return %c0_i32, %arg0 : i32, i32
  }
}

</mosaic_0001>

<llo_original>
// kernel: _forward_impl.1
$region0: #{_forward_impl.1}
  #allocation0 [shape = 'u32[]', space=smem, size = 0x4, offset = 0x4, fixed_abs, tag = 'smem constant byte address 0x4 - core index']
  #allocation1 [shape = 'u32[144,128]{1,0:T(1,128)}', space=vmem, size = 0x12000, scoped, tag = 'internal scratch']
  %s0 = inlined_call_operand.vmem [shape: f32[8,256], index: 0, kind: input, shape index: {}]
  %s1 = inlined_call_operand.vmem [shape: f32[16,16], index: 1, kind: input, shape index: {}]
  %s2 = inlined_call_operand.vmem [shape: f32[8,32], index: 2, kind: input, shape index: {}]
  %s3 = inlined_call_operand.vmem [shape: f32[16,4], index: 3, kind: input, shape index: {}]
  %s4 = inlined_call_operand.vmem [shape: f32[8,256], index: 4, kind: output, shape index: {}]
  %s5 = sld [smem:[#allocation0]]
  $region49: #{_forward_impl.1} parent=0
    _
  %s7 = ssub.s32 1, %s5
  %s8 = scalar_select 0, %s7, %s5
  loop: start=0, step=1, limit=4
  $region2: #{_forward_impl.1} parent=0 // loop_pre_header
    _
  $region3: #{_forward_impl.1} parent=0 // loop_header
    %s10 = sphi 0, %s14
    %p11 = scmp.ge.s32.totalorder %s10, 4
    %s20 = sphi 0, %s22
    %s23 = sphi 0, %s20
    %s24 = sphi 0, %s23
    %s40 = sphi 0, %s24
    %s44 = sphi 0, %s44
    %s46 = sphi 0, %s44
    %s47 = sphi 0, %s46
    %s61 = sphi 0, %s47
    %s65 = sphi 0, %s65
    %s67 = sphi 0, %s65
    %s68 = sphi 0, %s67
    %s82 = sphi 0, %s68
    %s86 = sphi 0, %s86
    %s88 = sphi 0, %s86
    %s89 = sphi 0, %s88
    %s103 = sphi 0, %s89
    %s109 = sphi 0, %s111
    %s112 = sphi 0, %s109
    %s113 = sphi 0, %s112
    %s129 = sphi 0, %s113
  $region4: #{_forward_impl.1} parent=0 // loop_header_branch
    %13 = sbr.rel (%p11) target = $region8
  $region5: #{_forward_impl.1} parent=0 // loop_body
    %s15 = ssub.s32 %s10, 1
    %s16 = ssub.s32 %s10, 2
    %s17 = sadd.s32 %s10, 1
    %s18 = ssub.s32 %s10, %s17
    %p19 = scmp.eq.s32.totalorder %s18, 0
    %s21 = sadd.s32 %s20, 1
    %s22 = scalar_select %p19, %s20, %s21
    %p25 = pneg %p19
    %p26 = scmp.eq.s32.totalorder %s10, 1
    %p27 = por %p25, %p26
    %p28 = scmp.ne.s32.totalorder %s20, %s23
    %p29 = scmp.eq.s32.totalorder %s10, 0
    %p30 = por %p28, %p29
    %p31 = scmp.ne.s32.totalorder %s20, %s23
    %p32 = scmp.eq.s32.totalorder %s15, 1
    %p33 = por %p31, %p32
    %p34 = scmp.ne.s32.totalorder %s23, %s24
    %p35 = scmp.eq.s32.totalorder %s15, 0
    %p36 = por %p34, %p35
    %p37 = scmp.ne.s32.totalorder %s23, %s24
    %p38 = scmp.eq.s32.totalorder %s16, 1
    %p39 = por %p37, %p38
    %p41 = scmp.ne.s32.totalorder %s24, %s40
    %p42 = scmp.eq.s32.totalorder %s16, 0
    %p43 = por %p41, %p42
    %s45 = sadd.s32 %s44, 1
    %p48 = scmp.eq.s32.totalorder %s10, 1
    %p49 = scmp.ne.s32.totalorder %s44, %s46
    %p50 = scmp.eq.s32.totalorder %s10, 0
    %p51 = por %p49, %p50
    %p52 = scmp.ne.s32.totalorder %s44, %s46
    %p53 = scmp.eq.s32.totalorder %s15, 1
    %p54 = por %p52, %p53
    %p55 = scmp.ne.s32.totalorder %s46, %s47
    %p56 = scmp.eq.s32.totalorder %s15, 0
    %p57 = por %p55, %p56
    %p58 = scmp.ne.s32.totalorder %s46, %s47
    %p59 = scmp.eq.s32.totalorder %s16, 1
    %p60 = por %p58, %p59
    %p62 = scmp.ne.s32.totalorder %s47, %s61
    %p63 = scmp.eq.s32.totalorder %s16, 0
    %p64 = por %p62, %p63
    %s66 = sadd.s32 %s65, 1
    %p69 = scmp.eq.s32.totalorder %s10, 1
    %p70 = scmp.ne.s32.totalorder %s65, %s67
    %p71 = scmp.eq.s32.totalorder %s10, 0
    %p72 = por %p70, %p71
    %p73 = scmp.ne.s32.totalorder %s65, %s67
    %p74 = scmp.eq.s32.totalorder %s15, 1
    %p75 = por %p73, %p74
    %p76 = scmp.ne.s32.totalorder %s67, %s68
    %p77 = scmp.eq.s32.totalorder %s15, 0
    %p78 = por %p76, %p77
    %p79 = scmp.ne.s32.totalorder %s67, %s68
    %p80 = scmp.eq.s32.totalorder %s16, 1
    %p81 = por %p79, %p80
    %p83 = scmp.ne.s32.totalorder %s68, %s82
    %p84 = scmp.eq.s32.totalorder %s16, 0
    %p85 = por %p83, %p84
    %s87 = sadd.s32 %s86, 1
    %p90 = scmp.eq.s32.totalorder %s10, 1
    %p91 = scmp.ne.s32.totalorder %s86, %s88
    %p92 = scmp.eq.s32.totalorder %s10, 0
    %p93 = por %p91, %p92
    %p94 = scmp.ne.s32.totalorder %s86, %s88
    %p95 = scmp.eq.s32.totalorder %s15, 1
    %p96 = por %p94, %p95
    %p97 = scmp.ne.s32.totalorder %s88, %s89
    %p98 = scmp.eq.s32.totalorder %s15, 0
    %p99 = por %p97, %p98
    %p100 = scmp.ne.s32.totalorder %s88, %s89
    %p101 = scmp.eq.s32.totalorder %s16, 1
    %p102 = por %p100, %p101
    %p104 = scmp.ne.s32.totalorder %s89, %s103
    %p105 = scmp.eq.s32.totalorder %s16, 0
    %p106 = por %p104, %p105
    %s107 = ssub.s32 %s10, %s17
    %p108 = scmp.eq.s32.totalorder %s107, 0
    %s110 = sadd.s32 %s109, 1
    %s111 = scalar_select %p108, %s109, %s110
    %p114 = pneg %p108
    %p115 = scmp.eq.s32.totalorder %s10, 1
    %p116 = por %p114, %p115
    %p117 = scmp.ne.s32.totalorder %s109, %s112
    %p118 = scmp.eq.s32.totalorder %s10, 0
    %p119 = por %p117, %p118
    %p120 = scmp.ne.s32.totalorder %s109, %s112
    %p121 = scmp.eq.s32.totalorder %s15, 1
    %p122 = por %p120, %p121
    %p123 = scmp.ne.s32.totalorder %s112, %s113
    %p124 = scmp.eq.s32.totalorder %s15, 0
    %p125 = por %p123, %p124
    %p126 = scmp.ne.s32.totalorder %s112, %s113
    %p127 = scmp.eq.s32.totalorder %s16, 1
    %p128 = por %p126, %p127
    %p130 = scmp.ne.s32.totalorder %s113, %s129
    %p131 = scmp.eq.s32.totalorder %s16, 0
    %p132 = por %p130, %p131
    %p133 = scmp.le.s32.totalorder 1, %s10
    %p134 = scmp.lt.s32.totalorder %s10, 3
    %p135 = pnand %p133, %p134
    %p136 = pneg %p135
    // Predicated region
    $region9: #{_forward_impl.1} parent=5 // pred_check
      _
    $region10: #{_forward_impl.1} parent=5 // pred_check_branch
      %138 = sbr.rel (%p135) target = $region12
    $region11: #{_forward_impl.1} parent=5 // pred_region
      %s139 = ssub.s32 %s10, 1
      // Predicated region
      $region13: #{_forward_impl.1} parent=11 // pred_check
        %p140 = pneg %p57
      $region14: #{_forward_impl.1} parent=11 // pred_check_branch
        %142 = sbr.rel (%p140) target = $region16
      $region15: #{_forward_impl.1} parent=11 // pred_region
        _
      $region16: #{_forward_impl.1} parent=11 // pred_fallthru
        _
      // Predicated region
      $region17: #{_forward_impl.1} parent=11 // pred_check
        %p143 = pneg %p78
      $region18: #{_forward_impl.1} parent=11 // pred_check_branch
        %145 = sbr.rel (%p143) target = $region20
      $region19: #{_forward_impl.1} parent=11 // pred_region
        _
      $region20: #{_forward_impl.1} parent=11 // pred_fallthru
        _
      // Predicated region
      $region21: #{_forward_impl.1} parent=11 // pred_check
        %p146 = pneg %p99
      $region22: #{_forward_impl.1} parent=11 // pred_check_branch
        %148 = sbr.rel (%p146) target = $region24
      $region23: #{_forward_impl.1} parent=11 // pred_region
        _
      $region24: #{_forward_impl.1} parent=11 // pred_fallthru
        _
    $region12: #{_forward_impl.1} parent=5 // pred_fallthru
      _
    %p149 = scmp.lt.s32.totalorder %s10, 2
    // Predicated region
    $region25: #{_forward_impl.1} parent=5 // pred_check
      %p150 = pneg %p149
    $region26: #{_forward_impl.1} parent=5 // pred_check_branch
      %152 = sbr.rel (%p150) target = $region28
    $region27: #{_forward_impl.1} parent=5 // pred_region
      // Predicated region
      $region29: #{_forward_impl.1} parent=27 // pred_check
        %p153 = pneg %p30
      $region30: #{_forward_impl.1} parent=27 // pred_check_branch
        %155 = sbr.rel (%p153) target = $region32
      $region31: #{_forward_impl.1} parent=27 // pred_region
        %p156 = scmp.lt.s32.totalorder %s10, 1
        %s157 = scalar_select %p156, %s10, 1
        %s158 = smul.addr %s157, 8
        %s159 = scalar_lea.vmem %s0, %s158
      $region32: #{_forward_impl.1} parent=27 // pred_fallthru
        _
    $region28: #{_forward_impl.1} parent=5 // pred_fallthru
      _
    %p160 = scmp.le.s32.totalorder 1, %s10
    %p161 = scmp.lt.s32.totalorder %s10, 3
    %p162 = pnand %p160, %p161
    %p163 = pneg %p162
    // Predicated region
    $region33: #{_forward_impl.1} parent=5 // pred_check
      _
    $region34: #{_forward_impl.1} parent=5 // pred_check_branch
      %165 = sbr.rel (%p162) target = $region36
    $region35: #{_forward_impl.1} parent=5 // pred_region
      %s166 = ssub.s32 %s10, 1
      %p167 = scmp.lt.s32.totalorder %s15, 1
      %s168 = scalar_select %p167, %s15, 1
      %s169 = smul.addr %s168, 8
      %s170 = scalar_lea.vmem %s0, %s169
      %p171 = pneg %p36
      %p172 = pneg %p33
      %p173 = pneg %p57
      %p174 = pneg %p54
      %p175 = pneg %p78
      %p176 = pneg %p75
      %p177 = pneg %p99
      %p178 = pneg %p96
      %p179 = pneg %p125
      %p180 = pneg %p122
      %p181 = scmp.lt.s32.totalorder %s15, 1
      %s182 = scalar_select %p181, %s15, 1
      %s183 = smul.addr %s182, 8
      %s184 = scalar_lea.vmem %s4, %s183
      %p185 = scmp.lt.s32.totalorder %s15, 1
      %s186 = scalar_select %p185, %s15, 1
      %s187 = smul.addr %s186, 8
      %s188 = scalar_lea.vmem %s0, %s187
      %p189 = scmp.lt.s32.totalorder %s15, 1
      %s190 = scalar_select %p189, %s15, 1
      %s191 = smul.addr %s190, 8
      %s192 = scalar_lea.vmem %s4, %s191
      %v193 = vld [vmem:[%s1] sm:$0xff]
      %v194 = vld [vmem:[%s1 + $0x8] sm:$0xff]
      %v195 = vld [vmem:[%s2] sm:$0xff]
      %v196 = vld [vmem:[%s3] sm:$0xff]
      %v197 = vld [vmem:[%s3 + $0x8] sm:$0xff]
      %v198 = vld [vmem:[%s188] sm:$0xff]
      %v199 = vmul.f32 %v198, 0.5
      %v200 = vand.u32 2147483647, %v199
      %vm201 = vcmp.le.f32.partialorder %v200, 0.7853982
      %vm202 = vcmp.lt.s32.totalorder %v199, 0
      %v203 = vand.u32 %v199, 2139095040
      %v204 = vshrl.u32 %v203, 23
      %v205 = vsub.s32 %v204, 127
      %v206 = vand.u32 2147483647, %v199
      %v207 = vand.u32 %v206, 8388607
      %v208 = vor.u32 %v207, 8388608
      %v209 = vsub.s32 0, %v208
      %v210 = vadd.s32 %v205, 1
      %vm211 = vcmp.gt.s32.totalorder %v210, 0
      %v212 = vsel %vm211, %v210, 0
      %v213 = vshrl.u32 %v212, 5
      %v214 = vand.u32 %v212, 31
      %v215 = vsub.s32 32, %v214
      %v216 = vshrl.u32 683565275, %v215
      %v217 = vshll.u32 683565275, %v214
      %v218 = vshrl.u32 2475754826, %v215
      %v219 = vor.u32 %v217, %v218
      %v220 = vshll.u32 2475754826, %v214
      %v221 = vshrl.u32 2131351028, %v215
      %v222 = vor.u32 %v220, %v221
      %v223 = vshll.u32 2131351028, %v214
      %v224 = vshrl.u32 2102212464, %v215
      %v225 = vor.u32 %v223, %v224
      %v226 = vshll.u32 2102212464, %v214
      %v227 = vshrl.u32 920167782, %v215
      %v228 = vor.u32 %v226, %v227
      %v229 = vshll.u32 920167782, %v214
      %v230 = vshrl.u32 1326507024, %v215
      %v231 = vor.u32 %v229, %v230
      %vm232 = vcmp.lt.s32.totalorder %v213, 1
      %vm233 = vcmp.lt.s32.totalorder %v213, 2
      %vm234 = vcmp.lt.s32.totalorder %v213, 3
      %vm235 = vcmp.lt.s32.totalorder %v213, 4
      %v236 = vsel %vm232, %v216, %v219
      %v237 = vsel %vm235, %v225, 2102212464
      %v238 = vsel %vm234, %v222, %v237
      %v239 = vsel %vm233, %v236, %v238
      %v240 = vsel %vm232, %v219, %v222
      %v241 = vsel %vm235, %v228, 920167782
      %v242 = vsel %vm234, %v225, %v241
      %v243 = vsel %vm233, %v240, %v242
      %v244 = vsel %vm232, %v222, %v225
      %v245 = vsel %vm235, %v231, 1326507024
      %v246 = vsel %vm234, %v228, %v245
      %v247 = vsel %vm233, %v244, %v246
      %v248 = vshll.u32 %v208, 8
      %v249 = vmul.u32.u64.compose %v248, %v247
      %v250 = vextract.low.u32 %v249
      %v251 = vextract.high.u32 %v249
      %v252 = vmul.u32.u64.compose %v248, %v243
      %v253 = vextract.low.u32 %v252
      %v254 = vextract.high.u32 %v252
      %v255 = vmul.u32 %v248, %v239
      %v256 = vadd.s32 %v251, %v253
      %vm257 = vc.u32 %v251, %v253
      %v258 = vadd.s32 %v254, 1
      %v259 = vsel %vm257, %v258, %v254
      %v260 = vadd.s32 %v255, %v259
      %v261 = vadd.s32 %v260, 536870912
      %v262 = vshrl.u32 %v261, 30
      %v263 = vshll.u32 %v262, 30
      %v264 = vsub.s32 %v260, %v263
      %vm265 = vcmp.lt.s32.totalorder %v264, 0
      %v266 = vsub.s32 0, %v264
      %v267 = vsel %vm265, %v266, %v264
      %v268 = vclz %v267
      %v269 = vsub.s32 %v268, 2
      %vm270 = vcmp.gt.s32.totalorder 0, %v269
      %v271 = vsel %vm270, 0, %v269
      %v272 = vsub.s32 32, %v271
      %v273 = vshll.u32 %v264, %v271
      %v274 = vshrl.u32 %v256, %v272
      %v275 = vor.u32 %v273, %v274
      %v276 = vsub.s32 4294967266, %v271
      %v277 = vadd.s32 %v276, 127
      %v278 = vshll.u32 %v277, 23
      %v279 = vor.u32 4788187, %v278
      %v280 = vand.u32 2147483647, %v279
      %v282 = vcvt.s32.f32 %v275
      %v283 = vmul.f32 %v282, %v280
      %v284 = vxor.u32 %v283, 2147483648
      %v285 = vsel %vm202, %v284, %v283
      %v286 = vsub.s32 4, %v262
      %v287 = vsel %vm202, %v286, %v262
      %v288 = vsel %vm201, %v199, %v285
      %v289 = vsel %vm201, 0, %v287
      %v290 = vcosq.f32.pop %v288
      %v291 = vsinq.f32.pop %v288
      %vm292 = vweird.f32 %v199
      %v293 = vand.u32 %v289, 3
      %vm294 = vcmp.lt.s32.totalorder %v293, 2
      %vm295 = vcmp.eq.s32.totalorder %v293, 0
      %v296 = vxor.u32 %v291, 2147483648
      %v297 = vsel %vm295, %v290, %v296
      %vm298 = vcmp.eq.s32.totalorder %v293, 2
      %v299 = vxor.u32 %v290, 2147483648
      %v300 = vsel %vm298, %v299, %v291
      %v301 = vsel %vm294, %v297, %v300
      %v302 = vsel %vm292, nan, %v301
      %v303 = vand.u32 2147483647, %v199
      %vm304 = vcmp.le.f32.partialorder %v303, 0.7853982
      %vm305 = vcmp.lt.s32.totalorder %v199, 0
      %v306 = vand.u32 %v199, 2139095040
      %v307 = vshrl.u32 %v306, 23
      %v308 = vsub.s32 %v307, 127
      %v309 = vand.u32 2147483647, %v199
      %v310 = vand.u32 %v309, 8388607
      %v311 = vor.u32 %v310, 8388608
      %v312 = vsub.s32 0, %v311
      %v313 = vadd.s32 %v308, 1
      %vm314 = vcmp.gt.s32.totalorder %v313, 0
      %v315 = vsel %vm314, %v313, 0
      %v316 = vshrl.u32 %v315, 5
      %v317 = vand.u32 %v315, 31
      %v318 = vsub.s32 32, %v317
      %v319 = vshrl.u32 683565275, %v318
      %v320 = vshll.u32 683565275, %v317
      %v321 = vshrl.u32 2475754826, %v318
      %v322 = vor.u32 %v320, %v321
      %v323 = vshll.u32 2475754826, %v317
      %v324 = vshrl.u32 2131351028, %v318
      %v325 = vor.u32 %v323, %v324
      %v326 = vshll.u32 2131351028, %v317
      %v327 = vshrl.u32 2102212464, %v318
      %v328 = vor.u32 %v326, %v327
      %v329 = vshll.u32 2102212464, %v317
      %v330 = vshrl.u32 920167782, %v318
      %v331 = vor.u32 %v329, %v330
      %v332 = vshll.u32 920167782, %v317
      %v333 = vshrl.u32 1326507024, %v318
      %v334 = vor.u32 %v332, %v333
      %vm335 = vcmp.lt.s32.totalorder %v316, 1
      %vm336 = vcmp.lt.s32.totalorder %v316, 2
      %vm337 = vcmp.lt.s32.totalorder %v316, 3
      %vm338 = vcmp.lt.s32.totalorder %v316, 4
      %v339 = vsel %vm335, %v319, %v322
      %v340 = vsel %vm338, %v328, 2102212464
      %v341 = vsel %vm337, %v325, %v340
      %v342 = vsel %vm336, %v339, %v341
      %v343 = vsel %vm335, %v322, %v325
      %v344 = vsel %vm338, %v331, 920167782
      %v345 = vsel %vm337, %v328, %v344
      %v346 = vsel %vm336, %v343, %v345
      %v347 = vsel %vm335, %v325, %v328
      %v348 = vsel %vm338, %v334, 1326507024
      %v349 = vsel %vm337, %v331, %v348
      %v350 = vsel %vm336, %v347, %v349
      %v351 = vshll.u32 %v311, 8
      %v352 = vmul.u32.u64.compose %v351, %v350
      %v353 = vextract.low.u32 %v352
      %v354 = vextract.high.u32 %v352
      %v355 = vmul.u32.u64.compose %v351, %v346
      %v356 = vextract.low.u32 %v355
      %v357 = vextract.high.u32 %v355
      %v358 = vmul.u32 %v351, %v342
      %v359 = vadd.s32 %v354, %v356
      %vm360 = vc.u32 %v354, %v356
      %v361 = vadd.s32 %v357, 1
      %v362 = vsel %vm360, %v361, %v357
      %v363 = vadd.s32 %v358, %v362
      %v364 = vadd.s32 %v363, 536870912
      %v365 = vshrl.u32 %v364, 30
      %v366 = vshll.u32 %v365, 30
      %v367 = vsub.s32 %v363, %v366
      %vm368 = vcmp.lt.s32.totalorder %v367, 0
      %v369 = vsub.s32 0, %v367
      %v370 = vsel %vm368, %v369, %v367
      %v371 = vclz %v370
      %v372 = vsub.s32 %v371, 2
      %vm373 = vcmp.gt.s32.totalorder 0, %v372
      %v374 = vsel %vm373, 0, %v372
      %v375 = vsub.s32 32, %v374
      %v376 = vshll.u32 %v367, %v374
      %v377 = vshrl.u32 %v359, %v375
      %v378 = vor.u32 %v376, %v377
      %v379 = vsub.s32 4294967266, %v374
      %v380 = vadd.s32 %v379, 127
      %v381 = vshll.u32 %v380, 23
      %v382 = vor.u32 4788187, %v381
      %v383 = vand.u32 2147483647, %v382
      %v385 = vcvt.s32.f32 %v378
      %v386 = vmul.f32 %v385, %v383
      %v387 = vxor.u32 %v386, 2147483648
      %v388 = vsel %vm305, %v387, %v386
      %v389 = vsub.s32 4, %v365
      %v390 = vsel %vm305, %v389, %v365
      %v391 = vsel %vm304, %v199, %v388
      %v392 = vsel %vm304, 0, %v390
      %v393 = vcosq.f32.pop %v391
      %v394 = vsinq.f32.pop %v391
      %vm395 = vweird.f32 %v199
      %v396 = vadd.s32 %v392, 3
      %v397 = vand.u32 %v396, 3
      %vm398 = vcmp.lt.s32.totalorder %v397, 2
      %vm399 = vcmp.eq.s32.totalorder %v397, 0
      %v400 = vxor.u32 %v394, 2147483648
      %v401 = vsel %vm399, %v393, %v400
      %vm402 = vcmp.eq.s32.totalorder %v397, 2
      %v403 = vxor.u32 %v393, 2147483648
      %v404 = vsel %vm402, %v403, %v394
      %v405 = vsel %vm398, %v401, %v404
      %v406 = vsel %vm395, nan, %v405
      %v407 = vsub.f32 %v406, %v302
      %409 = vset.pattern.permute.xlu0 0
      %410 = vperm.xlu0 %409, %v196
      %v411 = vpop.permute.xlu0 %410
      %414 = vset.pattern.permute.xlu0 0
      %415 = vperm.xlu0 %414, %v197
      %v416 = vpop.permute.xlu0 %415
      %v418 = vlaneseq
      %v419 = vshrl.u32 %v418, 7
      %v420 = vsub.s32 0, %v419
      %v421 = vrot.slane %v407, %v420
      %v422 = vmul.f32 %v411, %v421
      %v423 = vmul.f32 %v416, %v421
      %v424 = vlaneseq
      %v425 = vshrl.u32 %v424, 7
      %v426 = vsub.s32 0, %v425
      %v427 = vrot.slane %v302, %v426
      %v428 = vadd.f32 %v427, %v422
      %v429 = vadd.f32 %v427, %v423
      %430 = vset.pattern.permute.xlu0 1
      %431 = vperm.xlu0 %430, %v196
      %v432 = vpop.permute.xlu0 %431
      %434 = vset.pattern.permute.xlu0 1
      %435 = vperm.xlu0 %434, %v197
      %v436 = vpop.permute.xlu0 %435
      %v438 = vlaneseq
      %v439 = vshrl.u32 %v438, 7
      %v440 = vsub.s32 1, %v439
      %v441 = vrot.slane %v407, %v440
      %v442 = vmul.f32 %v432, %v441
      %v443 = vmul.f32 %v436, %v441
      %v444 = vlaneseq
      %v445 = vshrl.u32 %v444, 7
      %v446 = vsub.s32 1, %v445
      %v447 = vrot.slane %v302, %v446
      %v448 = vadd.f32 %v447, %v442
      %v449 = vadd.f32 %v447, %v443
      %v450 = vmul.f32 %v428, %v448
      %v451 = vmul.f32 %v429, %v449
      %452 = vset.pattern.permute.xlu0 2
      %453 = vperm.xlu0 %452, %v196
      %v454 = vpop.permute.xlu0 %453
      %456 = vset.pattern.permute.xlu0 2
      %457 = vperm.xlu0 %456, %v197
      %v458 = vpop.permute.xlu0 %457
      %v460 = vlaneseq
      %v461 = vshrl.u32 %v460, 7
      %v462 = vsub.s32 2, %v461
      %v463 = vrot.slane %v407, %v462
      %v464 = vmul.f32 %v454, %v463
      %v465 = vmul.f32 %v458, %v463
      %v466 = vlaneseq
      %v467 = vshrl.u32 %v466, 7
      %v468 = vsub.s32 2, %v467
      %v469 = vrot.slane %v302, %v468
      %v470 = vadd.f32 %v469, %v464
      %v471 = vadd.f32 %v469, %v465
      %v472 = vmul.f32 %v450, %v470
      %v473 = vmul.f32 %v451, %v471
      %474 = vset.pattern.permute.xlu0 3
      %475 = vperm.xlu0 %474, %v196
      %v476 = vpop.permute.xlu0 %475
      %478 = vset.pattern.permute.xlu0 3
      %479 = vperm.xlu0 %478, %v197
      %v480 = vpop.permute.xlu0 %479
      %v482 = vlaneseq
      %v483 = vshrl.u32 %v482, 7
      %v484 = vsub.s32 3, %v483
      %v485 = vrot.slane %v407, %v484
      %v486 = vmul.f32 %v476, %v485
      %v487 = vmul.f32 %v480, %v485
      %v488 = vlaneseq
      %v489 = vshrl.u32 %v488, 7
      %v490 = vsub.s32 3, %v489
      %v491 = vrot.slane %v302, %v490
      %v492 = vadd.f32 %v491, %v486
      %v493 = vadd.f32 %v491, %v487
      %v494 = vmul.f32 %v472, %v492
      %v495 = vmul.f32 %v473, %v493
      %vm496 = vcmask 130048
      %v498 = vsel %vm496, %v193, 0
      %v501 = vsel %vm496, %v194, 0
      %503 = vmatprep.subr.mxu0 0.0
      %504 = vmatpush1.msra.mxu0 0.0
      %505 = vmatprep.subr.mxu0 0.0
      %506 = vmatpush1.msra.mxu0 0.0
      %507 = vmatprep.subr.mxu0 0.0
      %508 = vmatpush1.msra.mxu0 0.0
      %509 = vmatprep.subr.mxu0 0.0
      %510 = vmatpush1.msra.mxu0 0.0
      %511 = vmatprep.subr.mxu0 0.0
      %512 = vmatpush1.msra.mxu0 0.0
      %513 = vmatprep.subr.mxu0 0.0
      %514 = vmatpush1.msra.mxu0 0.0
      %515 = vmatprep.subr.mxu0 0.0
      %516 = vmatpush1.msra.mxu0 0.0
      %517 = vmatprep.subr.mxu0 0.0
      %518 = vmatpush1.msra.mxu0 0.0
      %519 = vmatprep.subr.mxu0 0.0
      %520 = vmatpush1.msra.mxu0 0.0
      %521 = vmatprep.subr.mxu0 0.0
      %522 = vmatpush1.msra.mxu0 0.0
      %523 = vmatprep.subr.mxu0 0.0
      %524 = vmatpush1.msra.mxu0 0.0
      %525 = vmatprep.subr.mxu0 0.0
      %526 = vmatpush1.msra.mxu0 0.0
      %527 = vmatprep.subr.mxu0 0.0
      %528 = vmatpush1.msra.mxu0 0.0
      %529 = vmatprep.subr.mxu0 0.0
      %530 = vmatpush1.msra.mxu0 0.0
      %531 = vmatprep.subr.mxu0 0.0
      %v532 = vand.u32 %v495, 4294901760
      %533 = vmatpush1.msra.mxu0 %v532
      %534 = vmatprep.subr.mxu0 0.0
      %v535 = vand.u32 %v494, 4294901760
      %536 = vmatpush1.msra.mxu0 %v535
      %537 = vmatprep.subr.mxu0 0.0
      %538 = vmatpush2.msra.mxu0 0.0
      %539 = vmatprep.subr.mxu0 0.0
      %540 = vmatpush2.msra.mxu0 0.0
      %541 = vmatprep.subr.mxu0 0.0
      %542 = vmatpush2.msra.mxu0 0.0
      %543 = vmatprep.subr.mxu0 0.0
      %544 = vmatpush2.msra.mxu0 0.0
      %545 = vmatprep.subr.mxu0 0.0
      %546 = vmatpush2.msra.mxu0 0.0
      %547 = vmatprep.subr.mxu0 0.0
      %548 = vmatpush2.msra.mxu0 0.0
      %549 = vmatprep.subr.mxu0 0.0
      %550 = vmatpush2.msra.mxu0 0.0
      %551 = vmatprep.subr.mxu0 0.0
      %552 = vmatpush2.msra.mxu0 0.0
      %553 = vmatprep.subr.mxu0 0.0
      %554 = vmatpush2.msra.mxu0 0.0
      %555 = vmatprep.subr.mxu0 0.0
      %556 = vmatpush2.msra.mxu0 0.0
      %557 = vmatprep.subr.mxu0 0.0
      %558 = vmatpush2.msra.mxu0 0.0
      %559 = vmatprep.subr.mxu0 0.0
      %560 = vmatpush2.msra.mxu0 0.0
      %561 = vmatprep.subr.mxu0 0.0
      %562 = vmatpush2.msra.mxu0 0.0
      %563 = vmatprep.subr.mxu0 0.0
      %564 = vmatpush2.msra.mxu0 0.0
      %565 = vmatprep.subr.mxu0 0.0
      %566 = vmatpush2.msra.mxu0 0.0
      %567 = vmatprep.subr.mxu0 0.0
      %568 = vmatpush2.msra.mxu0 0.0
      %569 = vmatprep.mubr.f32.mxu0 0.0
      %v570 = vand.u32 %v498, 4294901760
      %v571 = vsub.f32 %v498, %v570
      %v572 = vand.u32 %v571, 4294901760
      %v573 = vsub.f32 %v571, %v572
      %v574 = vand.u32 %v573, 4294901760
      %575 = vmatmul.mubr.f32.gmra.mxu0 %v574
      %v576 = vpop.f32.mrf.mxu0
      %v577 = vadd.f32 0.0, %v576
      %v578 = vpop.f32.mrf.mxu0
      %579 = vmatprep.mubr.f32.mxu0 0.0
      %v580 = vand.u32 %v501, 4294901760
      %v581 = vsub.f32 %v501, %v580
      %v582 = vand.u32 %v581, 4294901760
      %v583 = vsub.f32 %v581, %v582
      %v584 = vand.u32 %v583, 4294901760
      %585 = vmatmul.mubr.f32.gmra.mxu0 %v584
      %v586 = vpop.f32.mrf.mxu0
      %v587 = vadd.f32 0.0, %v586
      %v588 = vpop.f32.mrf.mxu0
      %589 = vdwg.mxu0
      %590 = vmatprep.subr.mxu0 0.0
      %591 = vmatpush1.msra.mxu0 0.0
      %592 = vmatprep.subr.mxu0 0.0
      %593 = vmatpush1.msra.mxu0 0.0
      %594 = vmatprep.subr.mxu0 0.0
      %595 = vmatpush1.msra.mxu0 0.0
      %596 = vmatprep.subr.mxu0 0.0
      %597 = vmatpush1.msra.mxu0 0.0
      %598 = vmatprep.subr.mxu0 0.0
      %599 = vmatpush1.msra.mxu0 0.0
      %600 = vmatprep.subr.mxu0 0.0
      %601 = vmatpush1.msra.mxu0 0.0
      %602 = vmatprep.subr.mxu0 0.0
      %603 = vmatpush1.msra.mxu0 0.0
      %604 = vmatprep.subr.mxu0 0.0
      %605 = vmatpush1.msra.mxu0 0.0
      %606 = vmatprep.subr.mxu0 0.0
      %607 = vmatpush1.msra.mxu0 0.0
      %608 = vmatprep.subr.mxu0 0.0
      %609 = vmatpush1.msra.mxu0 0.0
      %610 = vmatprep.subr.mxu0 0.0
      %611 = vmatpush1.msra.mxu0 0.0
      %612 = vmatprep.subr.mxu0 0.0
      %613 = vmatpush1.msra.mxu0 0.0
      %614 = vmatprep.subr.mxu0 0.0
      %615 = vmatpush1.msra.mxu0 0.0
      %616 = vmatprep.subr.mxu0 0.0
      %617 = vmatpush1.msra.mxu0 0.0
      %618 = vmatprep.subr.mxu0 0.0
      %v619 = vand.u32 %v495, 4294901760
      %v620 = vsub.f32 %v495, %v619
      %v621 = vand.u32 %v620, 4294901760
      %v622 = vsub.f32 %v620, %v621
      %v623 = vand.u32 %v622, 4294901760
      %624 = vmatpush1.msra.mxu0 %v623
      %625 = vmatprep.subr.mxu0 0.0
      %v626 = vand.u32 %v494, 4294901760
      %v627 = vsub.f32 %v494, %v626
      %v628 = vand.u32 %v627, 4294901760
      %v629 = vsub.f32 %v627, %v628
      %v630 = vand.u32 %v629, 4294901760
      %631 = vmatpush1.msra.mxu0 %v630
      %632 = vmatprep.subr.mxu0 0.0
      %633 = vmatpush2.msra.mxu0 0.0
      %634 = vmatprep.subr.mxu0 0.0
      %635 = vmatpush2.msra.mxu0 0.0
      %636 = vmatprep.subr.mxu0 0.0
      %637 = vmatpush2.msra.mxu0 0.0
      %638 = vmatprep.subr.mxu0 0.0
      %639 = vmatpush2.msra.mxu0 0.0
      %640 = vmatprep.subr.mxu0 0.0
      %641 = vmatpush2.msra.mxu0 0.0
      %642 = vmatprep.subr.mxu0 0.0
      %643 = vmatpush2.msra.mxu0 0.0
      %644 = vmatprep.subr.mxu0 0.0
      %645 = vmatpush2.msra.mxu0 0.0
      %646 = vmatprep.subr.mxu0 0.0
      %647 = vmatpush2.msra.mxu0 0.0
      %648 = vmatprep.subr.mxu0 0.0
      %649 = vmatpush2.msra.mxu0 0.0
      %650 = vmatprep.subr.mxu0 0.0
      %651 = vmatpush2.msra.mxu0 0.0
      %652 = vmatprep.subr.mxu0 0.0
      %653 = vmatpush2.msra.mxu0 0.0
      %654 = vmatprep.subr.mxu0 0.0
      %655 = vmatpush2.msra.mxu0 0.0
      %656 = vmatprep.subr.mxu0 0.0
      %657 = vmatpush2.msra.mxu0 0.0
      %658 = vmatprep.subr.mxu0 0.0
      %659 = vmatpush2.msra.mxu0 0.0
      %660 = vmatprep.subr.mxu0 0.0
      %661 = vmatpush2.msra.mxu0 0.0
      %662 = vmatprep.subr.mxu0 0.0
      %663 = vmatpush2.msra.mxu0 0.0
      %664 = vmatprep.mubr.f32.mxu0 0.0
      %v665 = vand.u32 %v498, 4294901760
      %666 = vmatmul.mubr.f32.gmra.mxu0 %v665
      %v667 = vpop.f32.mrf.mxu0
      %v668 = vadd.f32 %v577, %v667
      %v669 = vpop.f32.mrf.mxu0
      %670 = vmatprep.mubr.f32.mxu0 0.0
      %v671 = vand.u32 %v501, 4294901760
      %672 = vmatmul.mubr.f32.gmra.mxu0 %v671
      %v673 = vpop.f32.mrf.mxu0
      %v674 = vadd.f32 %v587, %v673
      %v675 = vpop.f32.mrf.mxu0
      %676 = vdwg.mxu0
      %677 = vmatprep.subr.mxu0 0.0
      %678 = vmatpush1.msra.mxu0 0.0
      %679 = vmatprep.subr.mxu0 0.0
      %680 = vmatpush1.msra.mxu0 0.0
      %681 = vmatprep.subr.mxu0 0.0
      %682 = vmatpush1.msra.mxu0 0.0
      %683 = vmatprep.subr.mxu0 0.0
      %684 = vmatpush1.msra.mxu0 0.0
      %685 = vmatprep.subr.mxu0 0.0
      %686 = vmatpush1.msra.mxu0 0.0
      %687 = vmatprep.subr.mxu0 0.0
      %688 = vmatpush1.msra.mxu0 0.0
      %689 = vmatprep.subr.mxu0 0.0
      %690 = vmatpush1.msra.mxu0 0.0
      %691 = vmatprep.subr.mxu0 0.0
      %692 = vmatpush1.msra.mxu0 0.0
      %693 = vmatprep.subr.mxu0 0.0
      %694 = vmatpush1.msra.mxu0 0.0
      %695 = vmatprep.subr.mxu0 0.0
      %696 = vmatpush1.msra.mxu0 0.0
      %697 = vmatprep.subr.mxu0 0.0
      %698 = vmatpush1.msra.mxu0 0.0
      %699 = vmatprep.subr.mxu0 0.0
      %700 = vmatpush1.msra.mxu0 0.0
      %701 = vmatprep.subr.mxu0 0.0
      %702 = vmatpush1.msra.mxu0 0.0
      %703 = vmatprep.subr.mxu0 0.0
      %704 = vmatpush1.msra.mxu0 0.0
      %705 = vmatprep.subr.mxu0 0.0
      %v706 = vand.u32 %v495, 4294901760
      %v707 = vsub.f32 %v495, %v706
      %708 = vmatpush1.msra.mxu0 %v707
      %709 = vmatprep.subr.mxu0 0.0
      %v710 = vand.u32 %v494, 4294901760
      %v711 = vsub.f32 %v494, %v710
      %712 = vmatpush1.msra.mxu0 %v711
      %713 = vmatprep.subr.mxu0 0.0
      %714 = vmatpush2.msra.mxu0 0.0
      %715 = vmatprep.subr.mxu0 0.0
      %716 = vmatpush2.msra.mxu0 0.0
      %717 = vmatprep.subr.mxu0 0.0
      %718 = vmatpush2.msra.mxu0 0.0
      %719 = vmatprep.subr.mxu0 0.0
      %720 = vmatpush2.msra.mxu0 0.0
      %721 = vmatprep.subr.mxu0 0.0
      %722 = vmatpush2.msra.mxu0 0.0
      %723 = vmatprep.subr.mxu0 0.0
      %724 = vmatpush2.msra.mxu0 0.0
      %725 = vmatprep.subr.mxu0 0.0
      %726 = vmatpush2.msra.mxu0 0.0
      %727 = vmatprep.subr.mxu0 0.0
      %728 = vmatpush2.msra.mxu0 0.0
      %729 = vmatprep.subr.mxu0 0.0
      %730 = vmatpush2.msra.mxu0 0.0
      %731 = vmatprep.subr.mxu0 0.0
      %732 = vmatpush2.msra.mxu0 0.0
      %733 = vmatprep.subr.mxu0 0.0
      %734 = vmatpush2.msra.mxu0 0.0
      %735 = vmatprep.subr.mxu0 0.0
      %736 = vmatpush2.msra.mxu0 0.0
      %737 = vmatprep.subr.mxu0 0.0
      %738 = vmatpush2.msra.mxu0 0.0
      %739 = vmatprep.subr.mxu0 0.0
      %740 = vmatpush2.msra.mxu0 0.0
      %741 = vmatprep.subr.mxu0 0.0
      %742 = vmatpush2.msra.mxu0 0.0
      %743 = vmatprep.subr.mxu0 0.0
      %744 = vmatpush2.msra.mxu0 0.0
      %745 = vmatprep.mubr.f32.mxu0 0.0
      %v746 = vand.u32 %v498, 4294901760
      %v747 = vsub.f32 %v498, %v746
      %748 = vmatmul.mubr.f32.gmra.mxu0 %v747
      %v749 = vpop.f32.mrf.mxu0
      %v750 = vadd.f32 %v668, %v749
      %v751 = vpop.f32.mrf.mxu0
      %752 = vmatprep.mubr.f32.mxu0 0.0
      %v753 = vand.u32 %v501, 4294901760
      %v754 = vsub.f32 %v501, %v753
      %755 = vmatmul.mubr.f32.gmra.mxu0 %v754
      %v756 = vpop.f32.mrf.mxu0
      %v757 = vadd.f32 %v674, %v756
      %v758 = vpop.f32.mrf.mxu0
      %759 = vdwg.mxu0
      %760 = vmatprep.subr.mxu0 0.0
      %761 = vmatpush1.msra.mxu0 0.0
      %762 = vmatprep.subr.mxu0 0.0
      %763 = vmatpush1.msra.mxu0 0.0
      %764 = vmatprep.subr.mxu0 0.0
      %765 = vmatpush1.msra.mxu0 0.0
      %766 = vmatprep.subr.mxu0 0.0
      %767 = vmatpush1.msra.mxu0 0.0
      %768 = vmatprep.subr.mxu0 0.0
      %769 = vmatpush1.msra.mxu0 0.0
      %770 = vmatprep.subr.mxu0 0.0
      %771 = vmatpush1.msra.mxu0 0.0
      %772 = vmatprep.subr.mxu0 0.0
      %773 = vmatpush1.msra.mxu0 0.0
      %774 = vmatprep.subr.mxu0 0.0
      %775 = vmatpush1.msra.mxu0 0.0
      %776 = vmatprep.subr.mxu0 0.0
      %777 = vmatpush1.msra.mxu0 0.0
      %778 = vmatprep.subr.mxu0 0.0
      %779 = vmatpush1.msra.mxu0 0.0
      %780 = vmatprep.subr.mxu0 0.0
      %781 = vmatpush1.msra.mxu0 0.0
      %782 = vmatprep.subr.mxu0 0.0
      %783 = vmatpush1.msra.mxu0 0.0
      %784 = vmatprep.subr.mxu0 0.0
      %785 = vmatpush1.msra.mxu0 0.0
      %786 = vmatprep.subr.mxu0 0.0
      %787 = vmatpush1.msra.mxu0 0.0
      %788 = vmatprep.subr.mxu0 0.0
      %v789 = vand.u32 %v495, 4294901760
      %790 = vmatpush1.msra.mxu0 %v789
      %791 = vmatprep.subr.mxu0 0.0
      %v792 = vand.u32 %v494, 4294901760
      %793 = vmatpush1.msra.mxu0 %v792
      %794 = vmatprep.subr.mxu0 0.0
      %795 = vmatpush2.msra.mxu0 0.0
      %796 = vmatprep.subr.mxu0 0.0
      %797 = vmatpush2.msra.mxu0 0.0
      %798 = vmatprep.subr.mxu0 0.0
      %799 = vmatpush2.msra.mxu0 0.0
      %800 = vmatprep.subr.mxu0 0.0
      %801 = vmatpush2.msra.mxu0 0.0
      %802 = vmatprep.subr.mxu0 0.0
      %803 = vmatpush2.msra.mxu0 0.0
      %804 = vmatprep.subr.mxu0 0.0
      %805 = vmatpush2.msra.mxu0 0.0
      %806 = vmatprep.subr.mxu0 0.0
      %807 = vmatpush2.msra.mxu0 0.0
      %808 = vmatprep.subr.mxu0 0.0
      %809 = vmatpush2.msra.mxu0 0.0
      %810 = vmatprep.subr.mxu0 0.0
      %811 = vmatpush2.msra.mxu0 0.0
      %812 = vmatprep.subr.mxu0 0.0
      %813 = vmatpush2.msra.mxu0 0.0
      %814 = vmatprep.subr.mxu0 0.0
      %815 = vmatpush2.msra.mxu0 0.0
      %816 = vmatprep.subr.mxu0 0.0
      %817 = vmatpush2.msra.mxu0 0.0
      %818 = vmatprep.subr.mxu0 0.0
      %819 = vmatpush2.msra.mxu0 0.0
      %820 = vmatprep.subr.mxu0 0.0
      %821 = vmatpush2.msra.mxu0 0.0
      %822 = vmatprep.subr.mxu0 0.0
      %823 = vmatpush2.msra.mxu0 0.0
      %824 = vmatprep.subr.mxu0 0.0
      %825 = vmatpush2.msra.mxu0 0.0
      %826 = vmatprep.mubr.f32.mxu0 0.0
      %v827 = vand.u32 %v498, 4294901760
      %v828 = vsub.f32 %v498, %v827
      %v829 = vand.u32 %v828, 4294901760
      %830 = vmatmul.mubr.f32.gmra.mxu0 %v829
      %v831 = vpop.f32.mrf.mxu0
      %v832 = vadd.f32 %v750, %v831
      %v833 = vpop.f32.mrf.mxu0
      %834 = vmatprep.mubr.f32.mxu0 0.0
      %v835 = vand.u32 %v501, 4294901760
      %v836 = vsub.f32 %v501, %v835
      %v837 = vand.u32 %v836, 4294901760
      %838 = vmatmul.mubr.f32.gmra.mxu0 %v837
      %v839 = vpop.f32.mrf.mxu0
      %v840 = vadd.f32 %v757, %v839
      %v841 = vpop.f32.mrf.mxu0
      %842 = vdwg.mxu0
      %843 = vmatprep.subr.mxu0 0.0
      %844 = vmatpush1.msra.mxu0 0.0
      %845 = vmatprep.subr.mxu0 0.0
      %846 = vmatpush1.msra.mxu0 0.0
      %847 = vmatprep.subr.mxu0 0.0
      %848 = vmatpush1.msra.mxu0 0.0
      %849 = vmatprep.subr.mxu0 0.0
      %850 = vmatpush1.msra.mxu0 0.0
      %851 = vmatprep.subr.mxu0 0.0
      %852 = vmatpush1.msra.mxu0 0.0
      %853 = vmatprep.subr.mxu0 0.0
      %854 = vmatpush1.msra.mxu0 0.0
      %855 = vmatprep.subr.mxu0 0.0
      %856 = vmatpush1.msra.mxu0 0.0
      %857 = vmatprep.subr.mxu0 0.0
      %858 = vmatpush1.msra.mxu0 0.0
      %859 = vmatprep.subr.mxu0 0.0
      %860 = vmatpush1.msra.mxu0 0.0
      %861 = vmatprep.subr.mxu0 0.0
      %862 = vmatpush1.msra.mxu0 0.0
      %863 = vmatprep.subr.mxu0 0.0
      %864 = vmatpush1.msra.mxu0 0.0
      %865 = vmatprep.subr.mxu0 0.0
      %866 = vmatpush1.msra.mxu0 0.0
      %867 = vmatprep.subr.mxu0 0.0
      %868 = vmatpush1.msra.mxu0 0.0
      %869 = vmatprep.subr.mxu0 0.0
      %870 = vmatpush1.msra.mxu0 0.0
      %871 = vmatprep.subr.mxu0 0.0
      %v872 = vand.u32 %v495, 4294901760
      %v873 = vsub.f32 %v495, %v872
      %v874 = vand.u32 %v873, 4294901760
      %875 = vmatpush1.msra.mxu0 %v874
      %876 = vmatprep.subr.mxu0 0.0
      %v877 = vand.u32 %v494, 4294901760
      %v878 = vsub.f32 %v494, %v877
      %v879 = vand.u32 %v878, 4294901760
      %880 = vmatpush1.msra.mxu0 %v879
      %881 = vmatprep.subr.mxu0 0.0
      %882 = vmatpush2.msra.mxu0 0.0
      %883 = vmatprep.subr.mxu0 0.0
      %884 = vmatpush2.msra.mxu0 0.0
      %885 = vmatprep.subr.mxu0 0.0
      %886 = vmatpush2.msra.mxu0 0.0
      %887 = vmatprep.subr.mxu0 0.0
      %888 = vmatpush2.msra.mxu0 0.0
      %889 = vmatprep.subr.mxu0 0.0
      %890 = vmatpush2.msra.mxu0 0.0
      %891 = vmatprep.subr.mxu0 0.0
      %892 = vmatpush2.msra.mxu0 0.0
      %893 = vmatprep.subr.mxu0 0.0
      %894 = vmatpush2.msra.mxu0 0.0
      %895 = vmatprep.subr.mxu0 0.0
      %896 = vmatpush2.msra.mxu0 0.0
      %897 = vmatprep.subr.mxu0 0.0
      %898 = vmatpush2.msra.mxu0 0.0
      %899 = vmatprep.subr.mxu0 0.0
      %900 = vmatpush2.msra.mxu0 0.0
      %901 = vmatprep.subr.mxu0 0.0
      %902 = vmatpush2.msra.mxu0 0.0
      %903 = vmatprep.subr.mxu0 0.0
      %904 = vmatpush2.msra.mxu0 0.0
      %905 = vmatprep.subr.mxu0 0.0
      %906 = vmatpush2.msra.mxu0 0.0
      %907 = vmatprep.subr.mxu0 0.0
      %908 = vmatpush2.msra.mxu0 0.0
      %909 = vmatprep.subr.mxu0 0.0
      %910 = vmatpush2.msra.mxu0 0.0
      %911 = vmatprep.subr.mxu0 0.0
      %912 = vmatpush2.msra.mxu0 0.0
      %913 = vmatprep.mubr.f32.mxu0 0.0
      %v914 = vand.u32 %v498, 4294901760
      %915 = vmatmul.mubr.f32.gmra.mxu0 %v914
      %v916 = vpop.f32.mrf.mxu0
      %v917 = vadd.f32 %v832, %v916
      %v918 = vpop.f32.mrf.mxu0
      %919 = vmatprep.mubr.f32.mxu0 0.0
      %v920 = vand.u32 %v501, 4294901760
      %921 = vmatmul.mubr.f32.gmra.mxu0 %v920
      %v922 = vpop.f32.mrf.mxu0
      %v923 = vadd.f32 %v840, %v922
      %v924 = vpop.f32.mrf.mxu0
      %925 = vdwg.mxu0
      %926 = vmatprep.subr.mxu0 0.0
      %927 = vmatpush1.msra.mxu0 0.0
      %928 = vmatprep.subr.mxu0 0.0
      %929 = vmatpush1.msra.mxu0 0.0
      %930 = vmatprep.subr.mxu0 0.0
      %931 = vmatpush1.msra.mxu0 0.0
      %932 = vmatprep.subr.mxu0 0.0
      %933 = vmatpush1.msra.mxu0 0.0
      %934 = vmatprep.subr.mxu0 0.0
      %935 = vmatpush1.msra.mxu0 0.0
      %936 = vmatprep.subr.mxu0 0.0
      %937 = vmatpush1.msra.mxu0 0.0
      %938 = vmatprep.subr.mxu0 0.0
      %939 = vmatpush1.msra.mxu0 0.0
      %940 = vmatprep.subr.mxu0 0.0
      %941 = vmatpush1.msra.mxu0 0.0
      %942 = vmatprep.subr.mxu0 0.0
      %943 = vmatpush1.msra.mxu0 0.0
      %944 = vmatprep.subr.mxu0 0.0
      %945 = vmatpush1.msra.mxu0 0.0
      %946 = vmatprep.subr.mxu0 0.0
      %947 = vmatpush1.msra.mxu0 0.0
      %948 = vmatprep.subr.mxu0 0.0
      %949 = vmatpush1.msra.mxu0 0.0
      %950 = vmatprep.subr.mxu0 0.0
      %951 = vmatpush1.msra.mxu0 0.0
      %952 = vmatprep.subr.mxu0 0.0
      %953 = vmatpush1.msra.mxu0 0.0
      %954 = vmatprep.subr.mxu0 0.0
      %v955 = vand.u32 %v495, 4294901760
      %956 = vmatpush1.msra.mxu0 %v955
      %957 = vmatprep.subr.mxu0 0.0
      %v958 = vand.u32 %v494, 4294901760
      %959 = vmatpush1.msra.mxu0 %v958
      %960 = vmatprep.subr.mxu0 0.0
      %961 = vmatpush2.msra.mxu0 0.0
      %962 = vmatprep.subr.mxu0 0.0
      %963 = vmatpush2.msra.mxu0 0.0
      %964 = vmatprep.subr.mxu0 0.0
      %965 = vmatpush2.msra.mxu0 0.0
      %966 = vmatprep.subr.mxu0 0.0
      %967 = vmatpush2.msra.mxu0 0.0
      %968 = vmatprep.subr.mxu0 0.0
      %969 = vmatpush2.msra.mxu0 0.0
      %970 = vmatprep.subr.mxu0 0.0
      %971 = vmatpush2.msra.mxu0 0.0
      %972 = vmatprep.subr.mxu0 0.0
      %973 = vmatpush2.msra.mxu0 0.0
      %974 = vmatprep.subr.mxu0 0.0
      %975 = vmatpush2.msra.mxu0 0.0
      %976 = vmatprep.subr.mxu0 0.0
      %977 = vmatpush2.msra.mxu0 0.0
      %978 = vmatprep.subr.mxu0 0.0
      %979 = vmatpush2.msra.mxu0 0.0
      %980 = vmatprep.subr.mxu0 0.0
      %981 = vmatpush2.msra.mxu0 0.0
      %982 = vmatprep.subr.mxu0 0.0
      %983 = vmatpush2.msra.mxu0 0.0
      %984 = vmatprep.subr.mxu0 0.0
      %985 = vmatpush2.msra.mxu0 0.0
      %986 = vmatprep.subr.mxu0 0.0
      %987 = vmatpush2.msra.mxu0 0.0
      %988 = vmatprep.subr.mxu0 0.0
      %989 = vmatpush2.msra.mxu0 0.0
      %990 = vmatprep.subr.mxu0 0.0
      %991 = vmatpush2.msra.mxu0 0.0
      %992 = vmatprep.mubr.f32.mxu0 0.0
      %v993 = vand.u32 %v498, 4294901760
      %994 = vmatmul.mubr.f32.gmra.mxu0 %v993
      %v995 = vpop.f32.mrf.mxu0
      %v996 = vadd.f32 %v917, %v995
      %v997 = vpop.f32.mrf.mxu0
      %998 = vmatprep.mubr.f32.mxu0 0.0
      %v999 = vand.u32 %v501, 4294901760
      %1000 = vmatmul.mubr.f32.gmra.mxu0 %v999
      %v1001 = vpop.f32.mrf.mxu0
      %v1002 = vadd.f32 %v923, %v1001
      %v1003 = vpop.f32.mrf.mxu0
      %1004 = vdwg.mxu0
      %v1005 = vmul.f32 %v996, %v996
      %v1006 = vmul.f32 %v1002, %v1002
      %v1007 = vlaneseq
      %v1008 = vshrl.u32 %v1007, 7
      %v1009 = vsub.s32 4, %v1008
      %v1010 = vrot.slane %v407, %v1009
      %v1011 = vmul.f32 %v411, %v1010
      %v1012 = vmul.f32 %v416, %v1010
      %v1013 = vlaneseq
      %v1014 = vshrl.u32 %v1013, 7
      %v1015 = vsub.s32 4, %v1014
      %v1016 = vrot.slane %v302, %v1015
      %v1017 = vadd.f32 %v1016, %v1011
      %v1018 = vadd.f32 %v1016, %v1012
      %v1019 = vlaneseq
      %v1020 = vshrl.u32 %v1019, 7
      %v1021 = vsub.s32 5, %v1020
      %v1022 = vrot.slane %v407, %v1021
      %v1023 = vmul.f32 %v432, %v1022
      %v1024 = vmul.f32 %v436, %v1022
      %v1025 = vlaneseq
      %v1026 = vshrl.u32 %v1025, 7
      %v1027 = vsub.s32 5, %v1026
      %v1028 = vrot.slane %v302, %v1027
      %v1029 = vadd.f32 %v1028, %v1023
      %v1030 = vadd.f32 %v1028, %v1024
      %v1031 = vmul.f32 %v1017, %v1029
      %v1032 = vmul.f32 %v1018, %v1030
      %v1033 = vlaneseq
      %v1034 = vshrl.u32 %v1033, 7
      %v1035 = vsub.s32 6, %v1034
      %v1036 = vrot.slane %v407, %v1035
      %v1037 = vmul.f32 %v454, %v1036
      %v1038 = vmul.f32 %v458, %v1036
      %v1039 = vlaneseq
      %v1040 = vshrl.u32 %v1039, 7
      %v1041 = vsub.s32 6, %v1040
      %v1042 = vrot.slane %v302, %v1041
      %v1043 = vadd.f32 %v1042, %v1037
      %v1044 = vadd.f32 %v1042, %v1038
      %v1045 = vmul.f32 %v1031, %v1043
      %v1046 = vmul.f32 %v1032, %v1044
      %v1047 = vlaneseq
      %v1048 = vshrl.u32 %v1047, 7
      %v1049 = vsub.s32 7, %v1048
      %v1050 = vrot.slane %v407, %v1049
      %v1051 = vmul.f32 %v476, %v1050
      %v1052 = vmul.f32 %v480, %v1050
      %v1053 = vlaneseq
      %v1054 = vshrl.u32 %v1053, 7
      %v1055 = vsub.s32 7, %v1054
      %v1056 = vrot.slane %v302, %v1055
      %v1057 = vadd.f32 %v1056, %v1051
      %v1058 = vadd.f32 %v1056, %v1052
      %v1059 = vmul.f32 %v1045, %v1057
      %v1060 = vmul.f32 %v1046, %v1058
      %1061 = vmatprep.subr.mxu0 0.0
      %1062 = vmatpush1.msra.mxu0 0.0
      %1063 = vmatprep.subr.mxu0 0.0
      %1064 = vmatpush1.msra.mxu0 0.0
      %1065 = vmatprep.subr.mxu0 0.0
      %1066 = vmatpush1.msra.mxu0 0.0
      %1067 = vmatprep.subr.mxu0 0.0
      %1068 = vmatpush1.msra.mxu0 0.0
      %1069 = vmatprep.subr.mxu0 0.0
      %1070 = vmatpush1.msra.mxu0 0.0
      %1071 = vmatprep.subr.mxu0 0.0
      %1072 = vmatpush1.msra.mxu0 0.0
      %1073 = vmatprep.subr.mxu0 0.0
      %1074 = vmatpush1.msra.mxu0 0.0
      %1075 = vmatprep.subr.mxu0 0.0
      %1076 = vmatpush1.msra.mxu0 0.0
      %1077 = vmatprep.subr.mxu0 0.0
      %1078 = vmatpush1.msra.mxu0 0.0
      %1079 = vmatprep.subr.mxu0 0.0
      %1080 = vmatpush1.msra.mxu0 0.0
      %1081 = vmatprep.subr.mxu0 0.0
      %1082 = vmatpush1.msra.mxu0 0.0
      %1083 = vmatprep.subr.mxu0 0.0
      %1084 = vmatpush1.msra.mxu0 0.0
      %1085 = vmatprep.subr.mxu0 0.0
      %1086 = vmatpush1.msra.mxu0 0.0
      %1087 = vmatprep.subr.mxu0 0.0
      %1088 = vmatpush1.msra.mxu0 0.0
      %1089 = vmatprep.subr.mxu0 0.0
      %v1090 = vand.u32 %v1060, 4294901760
      %1091 = vmatpush1.msra.mxu0 %v1090
      %1092 = vmatprep.subr.mxu0 0.0
      %v1093 = vand.u32 %v1059, 4294901760
      %1094 = vmatpush1.msra.mxu0 %v1093
      %1095 = vmatprep.subr.mxu0 0.0
      %1096 = vmatpush2.msra.mxu0 0.0
      %1097 = vmatprep.subr.mxu0 0.0
      %1098 = vmatpush2.msra.mxu0 0.0
      %1099 = vmatprep.subr.mxu0 0.0
      %1100 = vmatpush2.msra.mxu0 0.0
      %1101 = vmatprep.subr.mxu0 0.0
      %1102 = vmatpush2.msra.mxu0 0.0
      %1103 = vmatprep.subr.mxu0 0.0
      %1104 = vmatpush2.msra.mxu0 0.0
      %1105 = vmatprep.subr.mxu0 0.0
      %1106 = vmatpush2.msra.mxu0 0.0
      %1107 = vmatprep.subr.mxu0 0.0
      %1108 = vmatpush2.msra.mxu0 0.0
      %1109 = vmatprep.subr.mxu0 0.0
      %1110 = vmatpush2.msra.mxu0 0.0
      %1111 = vmatprep.subr.mxu0 0.0
      %1112 = vmatpush2.msra.mxu0 0.0
      %1113 = vmatprep.subr.mxu0 0.0
      %1114 = vmatpush2.msra.mxu0 0.0
      %1115 = vmatprep.subr.mxu0 0.0
      %1116 = vmatpush2.msra.mxu0 0.0
      %1117 = vmatprep.subr.mxu0 0.0
      %1118 = vmatpush2.msra.mxu0 0.0
      %1119 = vmatprep.subr.mxu0 0.0
      %1120 = vmatpush2.msra.mxu0 0.0
      %1121 = vmatprep.subr.mxu0 0.0
      %1122 = vmatpush2.msra.mxu0 0.0
      %1123 = vmatprep.subr.mxu0 0.0
      %1124 = vmatpush2.msra.mxu0 0.0
      %1125 = vmatprep.subr.mxu0 0.0
      %1126 = vmatpush2.msra.mxu0 0.0
      %1127 = vmatprep.mubr.f32.mxu0 0.0
      %v1128 = vand.u32 %v498, 4294901760
      %v1129 = vsub.f32 %v498, %v1128
      %v1130 = vand.u32 %v1129, 4294901760
      %v1131 = vsub.f32 %v1129, %v1130
      %v1132 = vand.u32 %v1131, 4294901760
      %1133 = vmatmul.mubr.f32.gmra.mxu0 %v1132
      %v1134 = vpop.f32.mrf.mxu0
      %v1135 = vadd.f32 0.0, %v1134
      %v1136 = vpop.f32.mrf.mxu0
      %1137 = vmatprep.mubr.f32.mxu0 0.0
      %v1138 = vand.u32 %v501, 4294901760
      %v1139 = vsub.f32 %v501, %v1138
      %v1140 = vand.u32 %v1139, 4294901760
      %v1141 = vsub.f32 %v1139, %v1140
      %v1142 = vand.u32 %v1141, 4294901760
      %1143 = vmatmul.mubr.f32.gmra.mxu0 %v1142
      %v1144 = vpop.f32.mrf.mxu0
      %v1145 = vadd.f32 0.0, %v1144
      %v1146 = vpop.f32.mrf.mxu0
      %1147 = vdwg.mxu0
      %1148 = vmatprep.subr.mxu0 0.0
      %1149 = vmatpush1.msra.mxu0 0.0
      %1150 = vmatprep.subr.mxu0 0.0
      %1151 = vmatpush1.msra.mxu0 0.0
      %1152 = vmatprep.subr.mxu0 0.0
      %1153 = vmatpush1.msra.mxu0 0.0
      %1154 = vmatprep.subr.mxu0 0.0
      %1155 = vmatpush1.msra.mxu0 0.0
      %1156 = vmatprep.subr.mxu0 0.0
      %1157 = vmatpush1.msra.mxu0 0.0
      %1158 = vmatprep.subr.mxu0 0.0
      %1159 = vmatpush1.msra.mxu0 0.0
      %1160 = vmatprep.subr.mxu0 0.0
      %1161 = vmatpush1.msra.mxu0 0.0
      %1162 = vmatprep.subr.mxu0 0.0
      %1163 = vmatpush1.msra.mxu0 0.0
      %1164 = vmatprep.subr.mxu0 0.0
      %1165 = vmatpush1.msra.mxu0 0.0
      %1166 = vmatprep.subr.mxu0 0.0
      %1167 = vmatpush1.msra.mxu0 0.0
      %1168 = vmatprep.subr.mxu0 0.0
      %1169 = vmatpush1.msra.mxu0 0.0
      %1170 = vmatprep.subr.mxu0 0.0
      %1171 = vmatpush1.msra.mxu0 0.0
      %1172 = vmatprep.subr.mxu0 0.0
      %1173 = vmatpush1.msra.mxu0 0.0
      %1174 = vmatprep.subr.mxu0 0.0
      %1175 = vmatpush1.msra.mxu0 0.0
      %1176 = vmatprep.subr.mxu0 0.0
      %v1177 = vand.u32 %v1060, 4294901760
      %v1178 = vsub.f32 %v1060, %v1177
      %v1179 = vand.u32 %v1178, 4294901760
      %v1180 = vsub.f32 %v1178, %v1179
      %v1181 = vand.u32 %v1180, 4294901760
      %1182 = vmatpush1.msra.mxu0 %v1181
      %1183 = vmatprep.subr.mxu0 0.0
      %v1184 = vand.u32 %v1059, 4294901760
      %v1185 = vsub.f32 %v1059, %v1184
      %v1186 = vand.u32 %v1185, 4294901760
      %v1187 = vsub.f32 %v1185, %v1186
      %v1188 = vand.u32 %v1187, 4294901760
      %1189 = vmatpush1.msra.mxu0 %v1188
      %1190 = vmatprep.subr.mxu0 0.0
      %1191 = vmatpush2.msra.mxu0 0.0
      %1192 = vmatprep.subr.mxu0 0.0
      %1193 = vmatpush2.msra.mxu0 0.0
      %1194 = vmatprep.subr.mxu0 0.0
      %1195 = vmatpush2.msra.mxu0 0.0
      %1196 = vmatprep.subr.mxu0 0.0
      %1197 = vmatpush2.msra.mxu0 0.0
      %1198 = vmatprep.subr.mxu0 0.0
      %1199 = vmatpush2.msra.mxu0 0.0
      %1200 = vmatprep.subr.mxu0 0.0
      %1201 = vmatpush2.msra.mxu0 0.0
      %1202 = vmatprep.subr.mxu0 0.0
      %1203 = vmatpush2.msra.mxu0 0.0
      %1204 = vmatprep.subr.mxu0 0.0
      %1205 = vmatpush2.msra.mxu0 0.0
      %1206 = vmatprep.subr.mxu0 0.0
      %1207 = vmatpush2.msra.mxu0 0.0
      %1208 = vmatprep.subr.mxu0 0.0
      %1209 = vmatpush2.msra.mxu0 0.0
      %1210 = vmatprep.subr.mxu0 0.0
      %1211 = vmatpush2.msra.mxu0 0.0
      %1212 = vmatprep.subr.mxu0 0.0
      %1213 = vmatpush2.msra.mxu0 0.0
      %1214 = vmatprep.subr.mxu0 0.0
      %1215 = vmatpush2.msra.mxu0 0.0
      %1216 = vmatprep.subr.mxu0 0.0
      %1217 = vmatpush2.msra.mxu0 0.0
      %1218 = vmatprep.subr.mxu0 0.0
      %1219 = vmatpush2.msra.mxu0 0.0
      %1220 = vmatprep.subr.mxu0 0.0
      %1221 = vmatpush2.msra.mxu0 0.0
      %1222 = vmatprep.mubr.f32.mxu0 0.0
      %v1223 = vand.u32 %v498, 4294901760
      %1224 = vmatmul.mubr.f32.gmra.mxu0 %v1223
      %v1225 = vpop.f32.mrf.mxu0
      %v1226 = vadd.f32 %v1135, %v1225
      %v1227 = vpop.f32.mrf.mxu0
      %1228 = vmatprep.mubr.f32.mxu0 0.0
      %v1229 = vand.u32 %v501, 4294901760
      %1230 = vmatmul.mubr.f32.gmra.mxu0 %v1229
      %v1231 = vpop.f32.mrf.mxu0
      %v1232 = vadd.f32 %v1145, %v1231
      %v1233 = vpop.f32.mrf.mxu0
      %1234 = vdwg.mxu0
      %1235 = vmatprep.subr.mxu0 0.0
      %1236 = vmatpush1.msra.mxu0 0.0
      %1237 = vmatprep.subr.mxu0 0.0
      %1238 = vmatpush1.msra.mxu0 0.0
      %1239 = vmatprep.subr.mxu0 0.0
      %1240 = vmatpush1.msra.mxu0 0.0
      %1241 = vmatprep.subr.mxu0 0.0
      %1242 = vmatpush1.msra.mxu0 0.0
      %1243 = vmatprep.subr.mxu0 0.0
      %1244 = vmatpush1.msra.mxu0 0.0
      %1245 = vmatprep.subr.mxu0 0.0
      %1246 = vmatpush1.msra.mxu0 0.0
      %1247 = vmatprep.subr.mxu0 0.0
      %1248 = vmatpush1.msra.mxu0 0.0
      %1249 = vmatprep.subr.mxu0 0.0
      %1250 = vmatpush1.msra.mxu0 0.0
      %1251 = vmatprep.subr.mxu0 0.0
      %1252 = vmatpush1.msra.mxu0 0.0
      %1253 = vmatprep.subr.mxu0 0.0
      %1254 = vmatpush1.msra.mxu0 0.0
      %1255 = vmatprep.subr.mxu0 0.0
      %1256 = vmatpush1.msra.mxu0 0.0
      %1257 = vmatprep.subr.mxu0 0.0
      %1258 = vmatpush1.msra.mxu0 0.0
      %1259 = vmatprep.subr.mxu0 0.0
      %1260 = vmatpush1.msra.mxu0 0.0
      %1261 = vmatprep.subr.mxu0 0.0
      %1262 = vmatpush1.msra.mxu0 0.0
      %1263 = vmatprep.subr.mxu0 0.0
      %v1264 = vand.u32 %v1060, 4294901760
      %v1265 = vsub.f32 %v1060, %v1264
      %1266 = vmatpush1.msra.mxu0 %v1265
      %1267 = vmatprep.subr.mxu0 0.0
      %v1268 = vand.u32 %v1059, 4294901760
      %v1269 = vsub.f32 %v1059, %v1268
      %1270 = vmatpush1.msra.mxu0 %v1269
      %1271 = vmatprep.subr.mxu0 0.0
      %1272 = vmatpush2.msra.mxu0 0.0
      %1273 = vmatprep.subr.mxu0 0.0
      %1274 = vmatpush2.msra.mxu0 0.0
      %1275 = vmatprep.subr.mxu0 0.0
      %1276 = vmatpush2.msra.mxu0 0.0
      %1277 = vmatprep.subr.mxu0 0.0
      %1278 = vmatpush2.msra.mxu0 0.0
      %1279 = vmatprep.subr.mxu0 0.0
      %1280 = vmatpush2.msra.mxu0 0.0
      %1281 = vmatprep.subr.mxu0 0.0
      %1282 = vmatpush2.msra.mxu0 0.0
      %1283 = vmatprep.subr.mxu0 0.0
      %1284 = vmatpush2.msra.mxu0 0.0
      %1285 = vmatprep.subr.mxu0 0.0
      %1286 = vmatpush2.msra.mxu0 0.0
      %1287 = vmatprep.subr.mxu0 0.0
      %1288 = vmatpush2.msra.mxu0 0.0
      %1289 = vmatprep.subr.mxu0 0.0
      %1290 = vmatpush2.msra.mxu0 0.0
      %1291 = vmatprep.subr.mxu0 0.0
      %1292 = vmatpush2.msra.mxu0 0.0
      %1293 = vmatprep.subr.mxu0 0.0
      %1294 = vmatpush2.msra.mxu0 0.0
      %1295 = vmatprep.subr.mxu0 0.0
      %1296 = vmatpush2.msra.mxu0 0.0
      %1297 = vmatprep.subr.mxu0 0.0
      %1298 = vmatpush2.msra.mxu0 0.0
      %1299 = vmatprep.subr.mxu0 0.0
      %1300 = vmatpush2.msra.mxu0 0.0
      %1301 = vmatprep.subr.mxu0 0.0
      %1302 = vmatpush2.msra.mxu0 0.0
      %1303 = vmatprep.mubr.f32.mxu0 0.0
      %v1304 = vand.u32 %v498, 4294901760
      %v1305 = vsub.f32 %v498, %v1304
      %1306 = vmatmul.mubr.f32.gmra.mxu0 %v1305
      %v1307 = vpop.f32.mrf.mxu0
      %v1308 = vadd.f32 %v1226, %v1307
      %v1309 = vpop.f32.mrf.mxu0
      %1310 = vmatprep.mubr.f32.mxu0 0.0
      %v1311 = vand.u32 %v501, 4294901760
      %v1312 = vsub.f32 %v501, %v1311
      %1313 = vmatmul.mubr.f32.gmra.mxu0 %v1312
      %v1314 = vpop.f32.mrf.mxu0
      %v1315 = vadd.f32 %v1232, %v1314
      %v1316 = vpop.f32.mrf.mxu0
      %1317 = vdwg.mxu0
      %1318 = vmatprep.subr.mxu0 0.0
      %1319 = vmatpush1.msra.mxu0 0.0
      %1320 = vmatprep.subr.mxu0 0.0
      %1321 = vmatpush1.msra.mxu0 0.0
      %1322 = vmatprep.subr.mxu0 0.0
      %1323 = vmatpush1.msra.mxu0 0.0
      %1324 = vmatprep.subr.mxu0 0.0
      %1325 = vmatpush1.msra.mxu0 0.0
      %1326 = vmatprep.subr.mxu0 0.0
      %1327 = vmatpush1.msra.mxu0 0.0
      %1328 = vmatprep.subr.mxu0 0.0
      %1329 = vmatpush1.msra.mxu0 0.0
      %1330 = vmatprep.subr.mxu0 0.0
      %1331 = vmatpush1.msra.mxu0 0.0
      %1332 = vmatprep.subr.mxu0 0.0
      %1333 = vmatpush1.msra.mxu0 0.0
      %1334 = vmatprep.subr.mxu0 0.0
      %1335 = vmatpush1.msra.mxu0 0.0
      %1336 = vmatprep.subr.mxu0 0.0
      %1337 = vmatpush1.msra.mxu0 0.0
      %1338 = vmatprep.subr.mxu0 0.0
      %1339 = vmatpush1.msra.mxu0 0.0
      %1340 = vmatprep.subr.mxu0 0.0
      %1341 = vmatpush1.msra.mxu0 0.0
      %1342 = vmatprep.subr.mxu0 0.0
      %1343 = vmatpush1.msra.mxu0 0.0
      %1344 = vmatprep.subr.mxu0 0.0
      %1345 = vmatpush1.msra.mxu0 0.0
      %1346 = vmatprep.subr.mxu0 0.0
      %v1347 = vand.u32 %v1060, 4294901760
      %1348 = vmatpush1.msra.mxu0 %v1347
      %1349 = vmatprep.subr.mxu0 0.0
      %v1350 = vand.u32 %v1059, 4294901760
      %1351 = vmatpush1.msra.mxu0 %v1350
      %1352 = vmatprep.subr.mxu0 0.0
      %1353 = vmatpush2.msra.mxu0 0.0
      %1354 = vmatprep.subr.mxu0 0.0
      %1355 = vmatpush2.msra.mxu0 0.0
      %1356 = vmatprep.subr.mxu0 0.0
      %1357 = vmatpush2.msra.mxu0 0.0
      %1358 = vmatprep.subr.mxu0 0.0
      %1359 = vmatpush2.msra.mxu0 0.0
      %1360 = vmatprep.subr.mxu0 0.0
      %1361 = vmatpush2.msra.mxu0 0.0
      %1362 = vmatprep.subr.mxu0 0.0
      %1363 = vmatpush2.msra.mxu0 0.0
      %1364 = vmatprep.subr.mxu0 0.0
      %1365 = vmatpush2.msra.mxu0 0.0
      %1366 = vmatprep.subr.mxu0 0.0
      %1367 = vmatpush2.msra.mxu0 0.0
      %1368 = vmatprep.subr.mxu0 0.0
      %1369 = vmatpush2.msra.mxu0 0.0
      %1370 = vmatprep.subr.mxu0 0.0
      %1371 = vmatpush2.msra.mxu0 0.0
      %1372 = vmatprep.subr.mxu0 0.0
      %1373 = vmatpush2.msra.mxu0 0.0
      %1374 = vmatprep.subr.mxu0 0.0
      %1375 = vmatpush2.msra.mxu0 0.0
      %1376 = vmatprep.subr.mxu0 0.0
      %1377 = vmatpush2.msra.mxu0 0.0
      %1378 = vmatprep.subr.mxu0 0.0
      %1379 = vmatpush2.msra.mxu0 0.0
      %1380 = vmatprep.subr.mxu0 0.0
      %1381 = vmatpush2.msra.mxu0 0.0
      %1382 = vmatprep.subr.mxu0 0.0
      %1383 = vmatpush2.msra.mxu0 0.0
      %1384 = vmatprep.mubr.f32.mxu0 0.0
      %v1385 = vand.u32 %v498, 4294901760
      %v1386 = vsub.f32 %v498, %v1385
      %v1387 = vand.u32 %v1386, 4294901760
      %1388 = vmatmul.mubr.f32.gmra.mxu0 %v1387
      %v1389 = vpop.f32.mrf.mxu0
      %v1390 = vadd.f32 %v1308, %v1389
      %v1391 = vpop.f32.mrf.mxu0
      %1392 = vmatprep.mubr.f32.mxu0 0.0
      %v1393 = vand.u32 %v501, 4294901760
      %v1394 = vsub.f32 %v501, %v1393
      %v1395 = vand.u32 %v1394, 4294901760
      %1396 = vmatmul.mubr.f32.gmra.mxu0 %v1395
      %v1397 = vpop.f32.mrf.mxu0
      %v1398 = vadd.f32 %v1315, %v1397
      %v1399 = vpop.f32.mrf.mxu0
      %1400 = vdwg.mxu0
      %1401 = vmatprep.subr.mxu0 0.0
      %1402 = vmatpush1.msra.mxu0 0.0
      %1403 = vmatprep.subr.mxu0 0.0
      %1404 = vmatpush1.msra.mxu0 0.0
      %1405 = vmatprep.subr.mxu0 0.0
      %1406 = vmatpush1.msra.mxu0 0.0
      %1407 = vmatprep.subr.mxu0 0.0
      %1408 = vmatpush1.msra.mxu0 0.0
      %1409 = vmatprep.subr.mxu0 0.0
      %1410 = vmatpush1.msra.mxu0 0.0
      %1411 = vmatprep.subr.mxu0 0.0
      %1412 = vmatpush1.msra.mxu0 0.0
      %1413 = vmatprep.subr.mxu0 0.0
      %1414 = vmatpush1.msra.mxu0 0.0
      %1415 = vmatprep.subr.mxu0 0.0
      %1416 = vmatpush1.msra.mxu0 0.0
      %1417 = vmatprep.subr.mxu0 0.0
      %1418 = vmatpush1.msra.mxu0 0.0
      %1419 = vmatprep.subr.mxu0 0.0
      %1420 = vmatpush1.msra.mxu0 0.0
      %1421 = vmatprep.subr.mxu0 0.0
      %1422 = vmatpush1.msra.mxu0 0.0
      %1423 = vmatprep.subr.mxu0 0.0
      %1424 = vmatpush1.msra.mxu0 0.0
      %1425 = vmatprep.subr.mxu0 0.0
      %1426 = vmatpush1.msra.mxu0 0.0
      %1427 = vmatprep.subr.mxu0 0.0
      %1428 = vmatpush1.msra.mxu0 0.0
      %1429 = vmatprep.subr.mxu0 0.0
      %v1430 = vand.u32 %v1060, 4294901760
      %v1431 = vsub.f32 %v1060, %v1430
      %v1432 = vand.u32 %v1431, 4294901760
      %1433 = vmatpush1.msra.mxu0 %v1432
      %1434 = vmatprep.subr.mxu0 0.0
      %v1435 = vand.u32 %v1059, 4294901760
      %v1436 = vsub.f32 %v1059, %v1435
      %v1437 = vand.u32 %v1436, 4294901760
      %1438 = vmatpush1.msra.mxu0 %v1437
      %1439 = vmatprep.subr.mxu0 0.0
      %1440 = vmatpush2.msra.mxu0 0.0
      %1441 = vmatprep.subr.mxu0 0.0
      %1442 = vmatpush2.msra.mxu0 0.0
      %1443 = vmatprep.subr.mxu0 0.0
      %1444 = vmatpush2.msra.mxu0 0.0
      %1445 = vmatprep.subr.mxu0 0.0
      %1446 = vmatpush2.msra.mxu0 0.0
      %1447 = vmatprep.subr.mxu0 0.0
      %1448 = vmatpush2.msra.mxu0 0.0
      %1449 = vmatprep.subr.mxu0 0.0
      %1450 = vmatpush2.msra.mxu0 0.0
      %1451 = vmatprep.subr.mxu0 0.0
      %1452 = vmatpush2.msra.mxu0 0.0
      %1453 = vmatprep.subr.mxu0 0.0
      %1454 = vmatpush2.msra.mxu0 0.0
      %1455 = vmatprep.subr.mxu0 0.0
      %1456 = vmatpush2.msra.mxu0 0.0
      %1457 = vmatprep.subr.mxu0 0.0
      %1458 = vmatpush2.msra.mxu0 0.0
      %1459 = vmatprep.subr.mxu0 0.0
      %1460 = vmatpush2.msra.mxu0 0.0
      %1461 = vmatprep.subr.mxu0 0.0
      %1462 = vmatpush2.msra.mxu0 0.0
      %1463 = vmatprep.subr.mxu0 0.0
      %1464 = vmatpush2.msra.mxu0 0.0
      %1465 = vmatprep.subr.mxu0 0.0
      %1466 = vmatpush2.msra.mxu0 0.0
      %1467 = vmatprep.subr.mxu0 0.0
      %1468 = vmatpush2.msra.mxu0 0.0
      %1469 = vmatprep.subr.mxu0 0.0
      %1470 = vmatpush2.msra.mxu0 0.0
      %1471 = vmatprep.mubr.f32.mxu0 0.0
      %v1472 = vand.u32 %v498, 4294901760
      %1473 = vmatmul.mubr.f32.gmra.mxu0 %v1472
      %v1474 = vpop.f32.mrf.mxu0
      %v1475 = vadd.f32 %v1390, %v1474
      %v1476 = vpop.f32.mrf.mxu0
      %1477 = vmatprep.mubr.f32.mxu0 0.0
      %v1478 = vand.u32 %v501, 4294901760
      %1479 = vmatmul.mubr.f32.gmra.mxu0 %v1478
      %v1480 = vpop.f32.mrf.mxu0
      %v1481 = vadd.f32 %v1398, %v1480
      %v1482 = vpop.f32.mrf.mxu0
      %1483 = vdwg.mxu0
      %1484 = vmatprep.subr.mxu0 0.0
      %1485 = vmatpush1.msra.mxu0 0.0
      %1486 = vmatprep.subr.mxu0 0.0
      %1487 = vmatpush1.msra.mxu0 0.0
      %1488 = vmatprep.subr.mxu0 0.0
      %1489 = vmatpush1.msra.mxu0 0.0
      %1490 = vmatprep.subr.mxu0 0.0
      %1491 = vmatpush1.msra.mxu0 0.0
      %1492 = vmatprep.subr.mxu0 0.0
      %1493 = vmatpush1.msra.mxu0 0.0
      %1494 = vmatprep.subr.mxu0 0.0
      %1495 = vmatpush1.msra.mxu0 0.0
      %1496 = vmatprep.subr.mxu0 0.0
      %1497 = vmatpush1.msra.mxu0 0.0
      %1498 = vmatprep.subr.mxu0 0.0
      %1499 = vmatpush1.msra.mxu0 0.0
      %1500 = vmatprep.subr.mxu0 0.0
      %1501 = vmatpush1.msra.mxu0 0.0
      %1502 = vmatprep.subr.mxu0 0.0
      %1503 = vmatpush1.msra.mxu0 0.0
      %1504 = vmatprep.subr.mxu0 0.0
      %1505 = vmatpush1.msra.mxu0 0.0
      %1506 = vmatprep.subr.mxu0 0.0
      %1507 = vmatpush1.msra.mxu0 0.0
      %1508 = vmatprep.subr.mxu0 0.0
      %1509 = vmatpush1.msra.mxu0 0.0
      %1510 = vmatprep.subr.mxu0 0.0
      %1511 = vmatpush1.msra.mxu0 0.0
      %1512 = vmatprep.subr.mxu0 0.0
      %v1513 = vand.u32 %v1060, 4294901760
      %1514 = vmatpush1.msra.mxu0 %v1513
      %1515 = vmatprep.subr.mxu0 0.0
      %v1516 = vand.u32 %v1059, 4294901760
      %1517 = vmatpush1.msra.mxu0 %v1516
      %1518 = vmatprep.subr.mxu0 0.0
      %1519 = vmatpush2.msra.mxu0 0.0
      %1520 = vmatprep.subr.mxu0 0.0
      %1521 = vmatpush2.msra.mxu0 0.0
      %1522 = vmatprep.subr.mxu0 0.0
      %1523 = vmatpush2.msra.mxu0 0.0
      %1524 = vmatprep.subr.mxu0 0.0
      %1525 = vmatpush2.msra.mxu0 0.0
      %1526 = vmatprep.subr.mxu0 0.0
      %1527 = vmatpush2.msra.mxu0 0.0
      %1528 = vmatprep.subr.mxu0 0.0
      %1529 = vmatpush2.msra.mxu0 0.0
      %1530 = vmatprep.subr.mxu0 0.0
      %1531 = vmatpush2.msra.mxu0 0.0
      %1532 = vmatprep.subr.mxu0 0.0
      %1533 = vmatpush2.msra.mxu0 0.0
      %1534 = vmatprep.subr.mxu0 0.0
      %1535 = vmatpush2.msra.mxu0 0.0
      %1536 = vmatprep.subr.mxu0 0.0
      %1537 = vmatpush2.msra.mxu0 0.0
      %1538 = vmatprep.subr.mxu0 0.0
      %1539 = vmatpush2.msra.mxu0 0.0
      %1540 = vmatprep.subr.mxu0 0.0
      %1541 = vmatpush2.msra.mxu0 0.0
      %1542 = vmatprep.subr.mxu0 0.0
      %1543 = vmatpush2.msra.mxu0 0.0
      %1544 = vmatprep.subr.mxu0 0.0
      %1545 = vmatpush2.msra.mxu0 0.0
      %1546 = vmatprep.subr.mxu0 0.0
      %1547 = vmatpush2.msra.mxu0 0.0
      %1548 = vmatprep.subr.mxu0 0.0
      %1549 = vmatpush2.msra.mxu0 0.0
      %1550 = vmatprep.mubr.f32.mxu0 0.0
      %v1551 = vand.u32 %v498, 4294901760
      %1552 = vmatmul.mubr.f32.gmra.mxu0 %v1551
      %v1553 = vpop.f32.mrf.mxu0
      %v1554 = vadd.f32 %v1475, %v1553
      %v1555 = vpop.f32.mrf.mxu0
      %1556 = vmatprep.mubr.f32.mxu0 0.0
      %v1557 = vand.u32 %v501, 4294901760
      %1558 = vmatmul.mubr.f32.gmra.mxu0 %v1557
      %v1559 = vpop.f32.mrf.mxu0
      %v1560 = vadd.f32 %v1481, %v1559
      %v1561 = vpop.f32.mrf.mxu0
      %1562 = vdwg.mxu0
      %v1563 = vmul.f32 %v1554, %v1554
      %v1564 = vmul.f32 %v1560, %v1560
      %vm1565 = vcmask 261120
      %v1567 = vsel %vm1565, %v195, 0
      %1569 = vmatprep.subr.mxu0 0.0
      %1570 = vmatpush1.msra.mxu0 0.0
      %1571 = vmatprep.subr.mxu0 0.0
      %1572 = vmatpush1.msra.mxu0 0.0
      %1573 = vmatprep.subr.mxu0 0.0
      %1574 = vmatpush1.msra.mxu0 0.0
      %1575 = vmatprep.subr.mxu0 0.0
      %1576 = vmatpush1.msra.mxu0 0.0
      %1577 = vmatprep.subr.mxu0 0.0
      %1578 = vmatpush1.msra.mxu0 0.0
      %1579 = vmatprep.subr.mxu0 0.0
      %1580 = vmatpush1.msra.mxu0 0.0
      %1581 = vmatprep.subr.mxu0 0.0
      %1582 = vmatpush1.msra.mxu0 0.0
      %1583 = vmatprep.subr.mxu0 0.0
      %1584 = vmatpush1.msra.mxu0 0.0
      %1585 = vmatprep.subr.mxu0 0.0
      %1586 = vmatpush1.msra.mxu0 0.0
      %1587 = vmatprep.subr.mxu0 0.0
      %1588 = vmatpush1.msra.mxu0 0.0
      %1589 = vmatprep.subr.mxu0 0.0
      %1590 = vmatpush1.msra.mxu0 0.0
      %1591 = vmatprep.subr.mxu0 0.0
      %1592 = vmatpush1.msra.mxu0 0.0
      %1593 = vmatprep.subr.mxu0 0.0
      %v1594 = vand.u32 %v1564, 4294901760
      %1595 = vmatpush1.msra.mxu0 %v1594
      %1596 = vmatprep.subr.mxu0 0.0
      %v1597 = vand.u32 %v1563, 4294901760
      %1598 = vmatpush1.msra.mxu0 %v1597
      %1599 = vmatprep.subr.mxu0 0.0
      %v1600 = vand.u32 %v1006, 4294901760
      %1601 = vmatpush1.msra.mxu0 %v1600
      %1602 = vmatprep.subr.mxu0 0.0
      %v1603 = vand.u32 %v1005, 4294901760
      %1604 = vmatpush1.msra.mxu0 %v1603
      %1605 = vmatprep.subr.mxu0 0.0
      %1606 = vmatpush2.msra.mxu0 0.0
      %1607 = vmatprep.subr.mxu0 0.0
      %1608 = vmatpush2.msra.mxu0 0.0
      %1609 = vmatprep.subr.mxu0 0.0
      %1610 = vmatpush2.msra.mxu0 0.0
      %1611 = vmatprep.subr.mxu0 0.0
      %1612 = vmatpush2.msra.mxu0 0.0
      %1613 = vmatprep.subr.mxu0 0.0
      %1614 = vmatpush2.msra.mxu0 0.0
      %1615 = vmatprep.subr.mxu0 0.0
      %1616 = vmatpush2.msra.mxu0 0.0
      %1617 = vmatprep.subr.mxu0 0.0
      %1618 = vmatpush2.msra.mxu0 0.0
      %1619 = vmatprep.subr.mxu0 0.0
      %1620 = vmatpush2.msra.mxu0 0.0
      %1621 = vmatprep.subr.mxu0 0.0
      %1622 = vmatpush2.msra.mxu0 0.0
      %1623 = vmatprep.subr.mxu0 0.0
      %1624 = vmatpush2.msra.mxu0 0.0
      %1625 = vmatprep.subr.mxu0 0.0
      %1626 = vmatpush2.msra.mxu0 0.0
      %1627 = vmatprep.subr.mxu0 0.0
      %1628 = vmatpush2.msra.mxu0 0.0
      %1629 = vmatprep.subr.mxu0 0.0
      %1630 = vmatpush2.msra.mxu0 0.0
      %1631 = vmatprep.subr.mxu0 0.0
      %1632 = vmatpush2.msra.mxu0 0.0
      %1633 = vmatprep.subr.mxu0 0.0
      %1634 = vmatpush2.msra.mxu0 0.0
      %1635 = vmatprep.subr.mxu0 0.0
      %1636 = vmatpush2.msra.mxu0 0.0
      %1637 = vmatprep.mubr.f32.mxu0 0.0
      %v1638 = vand.u32 %v1567, 4294901760
      %v1639 = vsub.f32 %v1567, %v1638
      %v1640 = vand.u32 %v1639, 4294901760
      %v1641 = vsub.f32 %v1639, %v1640
      %v1642 = vand.u32 %v1641, 4294901760
      %1643 = vmatmul.mubr.f32.gmra.mxu0 %v1642
      %v1644 = vpop.f32.mrf.mxu0
      %v1645 = vadd.f32 0.0, %v1644
      %v1646 = vpop.f32.mrf.mxu0
      %1647 = vdwg.mxu0
      %1648 = vmatprep.subr.mxu0 0.0
      %1649 = vmatpush1.msra.mxu0 0.0
      %1650 = vmatprep.subr.mxu0 0.0
      %1651 = vmatpush1.msra.mxu0 0.0
      %1652 = vmatprep.subr.mxu0 0.0
      %1653 = vmatpush1.msra.mxu0 0.0
      %1654 = vmatprep.subr.mxu0 0.0
      %1655 = vmatpush1.msra.mxu0 0.0
      %1656 = vmatprep.subr.mxu0 0.0
      %1657 = vmatpush1.msra.mxu0 0.0
      %1658 = vmatprep.subr.mxu0 0.0
      %1659 = vmatpush1.msra.mxu0 0.0
      %1660 = vmatprep.subr.mxu0 0.0
      %1661 = vmatpush1.msra.mxu0 0.0
      %1662 = vmatprep.subr.mxu0 0.0
      %1663 = vmatpush1.msra.mxu0 0.0
      %1664 = vmatprep.subr.mxu0 0.0
      %1665 = vmatpush1.msra.mxu0 0.0
      %1666 = vmatprep.subr.mxu0 0.0
      %1667 = vmatpush1.msra.mxu0 0.0
      %1668 = vmatprep.subr.mxu0 0.0
      %1669 = vmatpush1.msra.mxu0 0.0
      %1670 = vmatprep.subr.mxu0 0.0
      %1671 = vmatpush1.msra.mxu0 0.0
      %1672 = vmatprep.subr.mxu0 0.0
      %v1673 = vand.u32 %v1564, 4294901760
      %v1674 = vsub.f32 %v1564, %v1673
      %v1675 = vand.u32 %v1674, 4294901760
      %v1676 = vsub.f32 %v1674, %v1675
      %v1677 = vand.u32 %v1676, 4294901760
      %1678 = vmatpush1.msra.mxu0 %v1677
      %1679 = vmatprep.subr.mxu0 0.0
      %v1680 = vand.u32 %v1563, 4294901760
      %v1681 = vsub.f32 %v1563, %v1680
      %v1682 = vand.u32 %v1681, 4294901760
      %v1683 = vsub.f32 %v1681, %v1682
      %v1684 = vand.u32 %v1683, 4294901760
      %1685 = vmatpush1.msra.mxu0 %v1684
      %1686 = vmatprep.subr.mxu0 0.0
      %v1687 = vand.u32 %v1006, 4294901760
      %v1688 = vsub.f32 %v1006, %v1687
      %v1689 = vand.u32 %v1688, 4294901760
      %v1690 = vsub.f32 %v1688, %v1689
      %v1691 = vand.u32 %v1690, 4294901760
      %1692 = vmatpush1.msra.mxu0 %v1691
      %1693 = vmatprep.subr.mxu0 0.0
      %v1694 = vand.u32 %v1005, 4294901760
      %v1695 = vsub.f32 %v1005, %v1694
      %v1696 = vand.u32 %v1695, 4294901760
      %v1697 = vsub.f32 %v1695, %v1696
      %v1698 = vand.u32 %v1697, 4294901760
      %1699 = vmatpush1.msra.mxu0 %v1698
      %1700 = vmatprep.subr.mxu0 0.0
      %1701 = vmatpush2.msra.mxu0 0.0
      %1702 = vmatprep.subr.mxu0 0.0
      %1703 = vmatpush2.msra.mxu0 0.0
      %1704 = vmatprep.subr.mxu0 0.0
      %1705 = vmatpush2.msra.mxu0 0.0
      %1706 = vmatprep.subr.mxu0 0.0
      %1707 = vmatpush2.msra.mxu0 0.0
      %1708 = vmatprep.subr.mxu0 0.0
      %1709 = vmatpush2.msra.mxu0 0.0
      %1710 = vmatprep.subr.mxu0 0.0
      %1711 = vmatpush2.msra.mxu0 0.0
      %1712 = vmatprep.subr.mxu0 0.0
      %1713 = vmatpush2.msra.mxu0 0.0
      %1714 = vmatprep.subr.mxu0 0.0
      %1715 = vmatpush2.msra.mxu0 0.0
      %1716 = vmatprep.subr.mxu0 0.0
      %1717 = vmatpush2.msra.mxu0 0.0
      %1718 = vmatprep.subr.mxu0 0.0
      %1719 = vmatpush2.msra.mxu0 0.0
      %1720 = vmatprep.subr.mxu0 0.0
      %1721 = vmatpush2.msra.mxu0 0.0
      %1722 = vmatprep.subr.mxu0 0.0
      %1723 = vmatpush2.msra.mxu0 0.0
      %1724 = vmatprep.subr.mxu0 0.0
      %1725 = vmatpush2.msra.mxu0 0.0
      %1726 = vmatprep.subr.mxu0 0.0
      %1727 = vmatpush2.msra.mxu0 0.0
      %1728 = vmatprep.subr.mxu0 0.0
      %1729 = vmatpush2.msra.mxu0 0.0
      %1730 = vmatprep.subr.mxu0 0.0
      %1731 = vmatpush2.msra.mxu0 0.0
      %1732 = vmatprep.mubr.f32.mxu0 0.0
      %v1733 = vand.u32 %v1567, 4294901760
      %1734 = vmatmul.mubr.f32.gmra.mxu0 %v1733
      %v1735 = vpop.f32.mrf.mxu0
      %v1736 = vadd.f32 %v1645, %v1735
      %v1737 = vpop.f32.mrf.mxu0
      %1738 = vdwg.mxu0
      %1739 = vmatprep.subr.mxu0 0.0
      %1740 = vmatpush1.msra.mxu0 0.0
      %1741 = vmatprep.subr.mxu0 0.0
      %1742 = vmatpush1.msra.mxu0 0.0
      %1743 = vmatprep.subr.mxu0 0.0
      %1744 = vmatpush1.msra.mxu0 0.0
      %1745 = vmatprep.subr.mxu0 0.0
      %1746 = vmatpush1.msra.mxu0 0.0
      %1747 = vmatprep.subr.mxu0 0.0
      %1748 = vmatpush1.msra.mxu0 0.0
      %1749 = vmatprep.subr.mxu0 0.0
      %1750 = vmatpush1.msra.mxu0 0.0
      %1751 = vmatprep.subr.mxu0 0.0
      %1752 = vmatpush1.msra.mxu0 0.0
      %1753 = vmatprep.subr.mxu0 0.0
      %1754 = vmatpush1.msra.mxu0 0.0
      %1755 = vmatprep.subr.mxu0 0.0
      %1756 = vmatpush1.msra.mxu0 0.0
      %1757 = vmatprep.subr.mxu0 0.0
      %1758 = vmatpush1.msra.mxu0 0.0
      %1759 = vmatprep.subr.mxu0 0.0
      %1760 = vmatpush1.msra.mxu0 0.0
      %1761 = vmatprep.subr.mxu0 0.0
      %1762 = vmatpush1.msra.mxu0 0.0
      %1763 = vmatprep.subr.mxu0 0.0
      %v1764 = vand.u32 %v1564, 4294901760
      %v1765 = vsub.f32 %v1564, %v1764
      %1766 = vmatpush1.msra.mxu0 %v1765
      %1767 = vmatprep.subr.mxu0 0.0
      %v1768 = vand.u32 %v1563, 4294901760
      %v1769 = vsub.f32 %v1563, %v1768
      %1770 = vmatpush1.msra.mxu0 %v1769
      %1771 = vmatprep.subr.mxu0 0.0
      %v1772 = vand.u32 %v1006, 4294901760
      %v1773 = vsub.f32 %v1006, %v1772
      %1774 = vmatpush1.msra.mxu0 %v1773
      %1775 = vmatprep.subr.mxu0 0.0
      %v1776 = vand.u32 %v1005, 4294901760
      %v1777 = vsub.f32 %v1005, %v1776
      %1778 = vmatpush1.msra.mxu0 %v1777
      %1779 = vmatprep.subr.mxu0 0.0
      %1780 = vmatpush2.msra.mxu0 0.0
      %1781 = vmatprep.subr.mxu0 0.0
      %1782 = vmatpush2.msra.mxu0 0.0
      %1783 = vmatprep.subr.mxu0 0.0
      %1784 = vmatpush2.msra.mxu0 0.0
      %1785 = vmatprep.subr.mxu0 0.0
      %1786 = vmatpush2.msra.mxu0 0.0
      %1787 = vmatprep.subr.mxu0 0.0
      %1788 = vmatpush2.msra.mxu0 0.0
      %1789 = vmatprep.subr.mxu0 0.0
      %1790 = vmatpush2.msra.mxu0 0.0
      %1791 = vmatprep.subr.mxu0 0.0
      %1792 = vmatpush2.msra.mxu0 0.0
      %1793 = vmatprep.subr.mxu0 0.0
      %1794 = vmatpush2.msra.mxu0 0.0
      %1795 = vmatprep.subr.mxu0 0.0
      %1796 = vmatpush2.msra.mxu0 0.0
      %1797 = vmatprep.subr.mxu0 0.0
      %1798 = vmatpush2.msra.mxu0 0.0
      %1799 = vmatprep.subr.mxu0 0.0
      %1800 = vmatpush2.msra.mxu0 0.0
      %1801 = vmatprep.subr.mxu0 0.0
      %1802 = vmatpush2.msra.mxu0 0.0
      %1803 = vmatprep.subr.mxu0 0.0
      %1804 = vmatpush2.msra.mxu0 0.0
      %1805 = vmatprep.subr.mxu0 0.0
      %1806 = vmatpush2.msra.mxu0 0.0
      %1807 = vmatprep.subr.mxu0 0.0
      %1808 = vmatpush2.msra.mxu0 0.0
      %1809 = vmatprep.subr.mxu0 0.0
      %1810 = vmatpush2.msra.mxu0 0.0
      %1811 = vmatprep.mubr.f32.mxu0 0.0
      %v1812 = vand.u32 %v1567, 4294901760
      %v1813 = vsub.f32 %v1567, %v1812
      %1814 = vmatmul.mubr.f32.gmra.mxu0 %v1813
      %v1815 = vpop.f32.mrf.mxu0
      %v1816 = vadd.f32 %v1736, %v1815
      %v1817 = vpop.f32.mrf.mxu0
      %1818 = vdwg.mxu0
      %1819 = vmatprep.subr.mxu0 0.0
      %1820 = vmatpush1.msra.mxu0 0.0
      %1821 = vmatprep.subr.mxu0 0.0
      %1822 = vmatpush1.msra.mxu0 0.0
      %1823 = vmatprep.subr.mxu0 0.0
      %1824 = vmatpush1.msra.mxu0 0.0
      %1825 = vmatprep.subr.mxu0 0.0
      %1826 = vmatpush1.msra.mxu0 0.0
      %1827 = vmatprep.subr.mxu0 0.0
      %1828 = vmatpush1.msra.mxu0 0.0
      %1829 = vmatprep.subr.mxu0 0.0
      %1830 = vmatpush1.msra.mxu0 0.0
      %1831 = vmatprep.subr.mxu0 0.0
      %1832 = vmatpush1.msra.mxu0 0.0
      %1833 = vmatprep.subr.mxu0 0.0
      %1834 = vmatpush1.msra.mxu0 0.0
      %1835 = vmatprep.subr.mxu0 0.0
      %1836 = vmatpush1.msra.mxu0 0.0
      %1837 = vmatprep.subr.mxu0 0.0
      %1838 = vmatpush1.msra.mxu0 0.0
      %1839 = vmatprep.subr.mxu0 0.0
      %1840 = vmatpush1.msra.mxu0 0.0
      %1841 = vmatprep.subr.mxu0 0.0
      %1842 = vmatpush1.msra.mxu0 0.0
      %1843 = vmatprep.subr.mxu0 0.0
      %v1844 = vand.u32 %v1564, 4294901760
      %1845 = vmatpush1.msra.mxu0 %v1844
      %1846 = vmatprep.subr.mxu0 0.0
      %v1847 = vand.u32 %v1563, 4294901760
      %1848 = vmatpush1.msra.mxu0 %v1847
      %1849 = vmatprep.subr.mxu0 0.0
      %v1850 = vand.u32 %v1006, 4294901760
      %1851 = vmatpush1.msra.mxu0 %v1850
      %1852 = vmatprep.subr.mxu0 0.0
      %v1853 = vand.u32 %v1005, 4294901760
      %1854 = vmatpush1.msra.mxu0 %v1853
      %1855 = vmatprep.subr.mxu0 0.0
      %1856 = vmatpush2.msra.mxu0 0.0
      %1857 = vmatprep.subr.mxu0 0.0
      %1858 = vmatpush2.msra.mxu0 0.0
      %1859 = vmatprep.subr.mxu0 0.0
      %1860 = vmatpush2.msra.mxu0 0.0
      %1861 = vmatprep.subr.mxu0 0.0
      %1862 = vmatpush2.msra.mxu0 0.0
      %1863 = vmatprep.subr.mxu0 0.0
      %1864 = vmatpush2.msra.mxu0 0.0
      %1865 = vmatprep.subr.mxu0 0.0
      %1866 = vmatpush2.msra.mxu0 0.0
      %1867 = vmatprep.subr.mxu0 0.0
      %1868 = vmatpush2.msra.mxu0 0.0
      %1869 = vmatprep.subr.mxu0 0.0
      %1870 = vmatpush2.msra.mxu0 0.0
      %1871 = vmatprep.subr.mxu0 0.0
      %1872 = vmatpush2.msra.mxu0 0.0
      %1873 = vmatprep.subr.mxu0 0.0
      %1874 = vmatpush2.msra.mxu0 0.0
      %1875 = vmatprep.subr.mxu0 0.0
      %1876 = vmatpush2.msra.mxu0 0.0
      %1877 = vmatprep.subr.mxu0 0.0
      %1878 = vmatpush2.msra.mxu0 0.0
      %1879 = vmatprep.subr.mxu0 0.0
      %1880 = vmatpush2.msra.mxu0 0.0
      %1881 = vmatprep.subr.mxu0 0.0
      %1882 = vmatpush2.msra.mxu0 0.0
      %1883 = vmatprep.subr.mxu0 0.0
      %1884 = vmatpush2.msra.mxu0 0.0
      %1885 = vmatprep.subr.mxu0 0.0
      %1886 = vmatpush2.msra.mxu0 0.0
      %1887 = vmatprep.mubr.f32.mxu0 0.0
      %v1888 = vand.u32 %v1567, 4294901760
      %v1889 = vsub.f32 %v1567, %v1888
      %v1890 = vand.u32 %v1889, 4294901760
      %1891 = vmatmul.mubr.f32.gmra.mxu0 %v1890
      %v1892 = vpop.f32.mrf.mxu0
      %v1893 = vadd.f32 %v1816, %v1892
      %v1894 = vpop.f32.mrf.mxu0
      %1895 = vdwg.mxu0
      %1896 = vmatprep.subr.mxu0 0.0
      %1897 = vmatpush1.msra.mxu0 0.0
      %1898 = vmatprep.subr.mxu0 0.0
      %1899 = vmatpush1.msra.mxu0 0.0
      %1900 = vmatprep.subr.mxu0 0.0
      %1901 = vmatpush1.msra.mxu0 0.0
      %1902 = vmatprep.subr.mxu0 0.0
      %1903 = vmatpush1.msra.mxu0 0.0
      %1904 = vmatprep.subr.mxu0 0.0
      %1905 = vmatpush1.msra.mxu0 0.0
      %1906 = vmatprep.subr.mxu0 0.0
      %1907 = vmatpush1.msra.mxu0 0.0
      %1908 = vmatprep.subr.mxu0 0.0
      %1909 = vmatpush1.msra.mxu0 0.0
      %1910 = vmatprep.subr.mxu0 0.0
      %1911 = vmatpush1.msra.mxu0 0.0
      %1912 = vmatprep.subr.mxu0 0.0
      %1913 = vmatpush1.msra.mxu0 0.0
      %1914 = vmatprep.subr.mxu0 0.0
      %1915 = vmatpush1.msra.mxu0 0.0
      %1916 = vmatprep.subr.mxu0 0.0
      %1917 = vmatpush1.msra.mxu0 0.0
      %1918 = vmatprep.subr.mxu0 0.0
      %1919 = vmatpush1.msra.mxu0 0.0
      %1920 = vmatprep.subr.mxu0 0.0
      %v1921 = vand.u32 %v1564, 4294901760
      %v1922 = vsub.f32 %v1564, %v1921
      %v1923 = vand.u32 %v1922, 4294901760
      %1924 = vmatpush1.msra.mxu0 %v1923
      %1925 = vmatprep.subr.mxu0 0.0
      %v1926 = vand.u32 %v1563, 4294901760
      %v1927 = vsub.f32 %v1563, %v1926
      %v1928 = vand.u32 %v1927, 4294901760
      %1929 = vmatpush1.msra.mxu0 %v1928
      %1930 = vmatprep.subr.mxu0 0.0
      %v1931 = vand.u32 %v1006, 4294901760
      %v1932 = vsub.f32 %v1006, %v1931
      %v1933 = vand.u32 %v1932, 4294901760
      %1934 = vmatpush1.msra.mxu0 %v1933
      %1935 = vmatprep.subr.mxu0 0.0
      %v1936 = vand.u32 %v1005, 4294901760
      %v1937 = vsub.f32 %v1005, %v1936
      %v1938 = vand.u32 %v1937, 4294901760
      %1939 = vmatpush1.msra.mxu0 %v1938
      %1940 = vmatprep.subr.mxu0 0.0
      %1941 = vmatpush2.msra.mxu0 0.0
      %1942 = vmatprep.subr.mxu0 0.0
      %1943 = vmatpush2.msra.mxu0 0.0
      %1944 = vmatprep.subr.mxu0 0.0
      %1945 = vmatpush2.msra.mxu0 0.0
      %1946 = vmatprep.subr.mxu0 0.0
      %1947 = vmatpush2.msra.mxu0 0.0
      %1948 = vmatprep.subr.mxu0 0.0
      %1949 = vmatpush2.msra.mxu0 0.0
      %1950 = vmatprep.subr.mxu0 0.0
      %1951 = vmatpush2.msra.mxu0 0.0
      %1952 = vmatprep.subr.mxu0 0.0
      %1953 = vmatpush2.msra.mxu0 0.0
      %1954 = vmatprep.subr.mxu0 0.0
      %1955 = vmatpush2.msra.mxu0 0.0
      %1956 = vmatprep.subr.mxu0 0.0
      %1957 = vmatpush2.msra.mxu0 0.0
      %1958 = vmatprep.subr.mxu0 0.0
      %1959 = vmatpush2.msra.mxu0 0.0
      %1960 = vmatprep.subr.mxu0 0.0
      %1961 = vmatpush2.msra.mxu0 0.0
      %1962 = vmatprep.subr.mxu0 0.0
      %1963 = vmatpush2.msra.mxu0 0.0
      %1964 = vmatprep.subr.mxu0 0.0
      %1965 = vmatpush2.msra.mxu0 0.0
      %1966 = vmatprep.subr.mxu0 0.0
      %1967 = vmatpush2.msra.mxu0 0.0
      %1968 = vmatprep.subr.mxu0 0.0
      %1969 = vmatpush2.msra.mxu0 0.0
      %1970 = vmatprep.subr.mxu0 0.0
      %1971 = vmatpush2.msra.mxu0 0.0
      %1972 = vmatprep.mubr.f32.mxu0 0.0
      %v1973 = vand.u32 %v1567, 4294901760
      %1974 = vmatmul.mubr.f32.gmra.mxu0 %v1973
      %v1975 = vpop.f32.mrf.mxu0
      %v1976 = vadd.f32 %v1893, %v1975
      %v1977 = vpop.f32.mrf.mxu0
      %1978 = vdwg.mxu0
      %1979 = vmatprep.subr.mxu0 0.0
      %1980 = vmatpush1.msra.mxu0 0.0
      %1981 = vmatprep.subr.mxu0 0.0
      %1982 = vmatpush1.msra.mxu0 0.0
      %1983 = vmatprep.subr.mxu0 0.0
      %1984 = vmatpush1.msra.mxu0 0.0
      %1985 = vmatprep.subr.mxu0 0.0
      %1986 = vmatpush1.msra.mxu0 0.0
      %1987 = vmatprep.subr.mxu0 0.0
      %1988 = vmatpush1.msra.mxu0 0.0
      %1989 = vmatprep.subr.mxu0 0.0
      %1990 = vmatpush1.msra.mxu0 0.0
      %1991 = vmatprep.subr.mxu0 0.0
      %1992 = vmatpush1.msra.mxu0 0.0
      %1993 = vmatprep.subr.mxu0 0.0
      %1994 = vmatpush1.msra.mxu0 0.0
      %1995 = vmatprep.subr.mxu0 0.0
      %1996 = vmatpush1.msra.mxu0 0.0
      %1997 = vmatprep.subr.mxu0 0.0
      %1998 = vmatpush1.msra.mxu0 0.0
      %1999 = vmatprep.subr.mxu0 0.0
      %2000 = vmatpush1.msra.mxu0 0.0
      %2001 = vmatprep.subr.mxu0 0.0
      %2002 = vmatpush1.msra.mxu0 0.0
      %2003 = vmatprep.subr.mxu0 0.0
      %v2004 = vand.u32 %v1564, 4294901760
      %2005 = vmatpush1.msra.mxu0 %v2004
      %2006 = vmatprep.subr.mxu0 0.0
      %v2007 = vand.u32 %v1563, 4294901760
      %2008 = vmatpush1.msra.mxu0 %v2007
      %2009 = vmatprep.subr.mxu0 0.0
      %v2010 = vand.u32 %v1006, 4294901760
      %2011 = vmatpush1.msra.mxu0 %v2010
      %2012 = vmatprep.subr.mxu0 0.0
      %v2013 = vand.u32 %v1005, 4294901760
      %2014 = vmatpush1.msra.mxu0 %v2013
      %2015 = vmatprep.subr.mxu0 0.0
      %2016 = vmatpush2.msra.mxu0 0.0
      %2017 = vmatprep.subr.mxu0 0.0
      %2018 = vmatpush2.msra.mxu0 0.0
      %2019 = vmatprep.subr.mxu0 0.0
      %2020 = vmatpush2.msra.mxu0 0.0
      %2021 = vmatprep.subr.mxu0 0.0
      %2022 = vmatpush2.msra.mxu0 0.0
      %2023 = vmatprep.subr.mxu0 0.0
      %2024 = vmatpush2.msra.mxu0 0.0
      %2025 = vmatprep.subr.mxu0 0.0
      %2026 = vmatpush2.msra.mxu0 0.0
      %2027 = vmatprep.subr.mxu0 0.0
      %2028 = vmatpush2.msra.mxu0 0.0
      %2029 = vmatprep.subr.mxu0 0.0
      %2030 = vmatpush2.msra.mxu0 0.0
      %2031 = vmatprep.subr.mxu0 0.0
      %2032 = vmatpush2.msra.mxu0 0.0
      %2033 = vmatprep.subr.mxu0 0.0
      %2034 = vmatpush2.msra.mxu0 0.0
      %2035 = vmatprep.subr.mxu0 0.0
      %2036 = vmatpush2.msra.mxu0 0.0
      %2037 = vmatprep.subr.mxu0 0.0
      %2038 = vmatpush2.msra.mxu0 0.0
      %2039 = vmatprep.subr.mxu0 0.0
      %2040 = vmatpush2.msra.mxu0 0.0
      %2041 = vmatprep.subr.mxu0 0.0
      %2042 = vmatpush2.msra.mxu0 0.0
      %2043 = vmatprep.subr.mxu0 0.0
      %2044 = vmatpush2.msra.mxu0 0.0
      %2045 = vmatprep.subr.mxu0 0.0
      %2046 = vmatpush2.msra.mxu0 0.0
      %2047 = vmatprep.mubr.f32.mxu0 0.0
      %v2048 = vand.u32 %v1567, 4294901760
      %2049 = vmatmul.mubr.f32.gmra.mxu0 %v2048
      %v2050 = vpop.f32.mrf.mxu0
      %v2051 = vadd.f32 %v1976, %v2050
      %v2052 = vpop.f32.mrf.mxu0
      %2053 = vdwg.mxu0
      %2054 = vst [vmem:[%s192] sm:$0xff] %v2051
      %p2055 = scmp.lt.s32.totalorder %s15, 1
      %s2056 = scalar_select %p2055, %s15, 1
      %s2057 = smul.addr %s2056, 8
      %s2058 = scalar_lea.vmem %s4, %s2057
      // Predicated region
      $region37: #{_forward_impl.1} parent=35 // pred_check
        %p2059 = pneg %p122
      $region38: #{_forward_impl.1} parent=35 // pred_check_branch
        %2061 = sbr.rel (%p2059) target = $region40
      $region39: #{_forward_impl.1} parent=35 // pred_region
        _
      $region40: #{_forward_impl.1} parent=35 // pred_fallthru
        _
    $region36: #{_forward_impl.1} parent=5 // pred_fallthru
      _
    %p2062 = scmp.le.s32.totalorder 2, %s10
    // Predicated region
    $region41: #{_forward_impl.1} parent=5 // pred_check
      %p2063 = pneg %p2062
    $region42: #{_forward_impl.1} parent=5 // pred_check_branch
      %2065 = sbr.rel (%p2063) target = $region44
    $region43: #{_forward_impl.1} parent=5 // pred_region
      %s2066 = ssub.s32 %s10, 2
      // Predicated region
      $region45: #{_forward_impl.1} parent=43 // pred_check
        %p2067 = pneg %p128
      $region46: #{_forward_impl.1} parent=43 // pred_check_branch
        %2069 = sbr.rel (%p2067) target = $region48
      $region47: #{_forward_impl.1} parent=43 // pred_region
        %p2070 = scmp.lt.s32.totalorder %s16, 1
        %s2071 = scalar_select %p2070, %s16, 1
        %s2072 = smul.addr %s2071, 8
        %s2073 = scalar_lea.vmem %s4, %s2072
      $region48: #{_forward_impl.1} parent=43 // pred_fallthru
        _
    $region44: #{_forward_impl.1} parent=5 // pred_fallthru
      _
  $region6: #{_forward_impl.1} parent=0 // loop_footer
    %s14 = sadd.s32 1, %s10
  $region7: #{_forward_impl.1} parent=0 // loop_footer_branch
    %9 = sbr.rel target = $region3
  $region8: #{_forward_impl.1} parent=0 // loop_exit
    _

</llo_original>
